<compile_context>
chip_gen: v7x
topology: tpu7x:2x2x1
jax: 0.10.0
libtpu: 0.0.40
codegen_flags: <defaults>
</compile_context>

<pallas_src>
import functools

import jax
import jax.numpy as jnp
from jax.experimental import pallas as pl
from jax.experimental.pallas import tpu as pltpu


def _rows_to_lanes(x3):
    """(Bt, R, L) -> (Bt, R*L): fold the row axis into lanes so the output
    store / HBM writeback is lane-dense.  Implemented as a lane concat of row
    slices because Mosaic's shape_cast does not reliably support sublane->lane
    merges when L is not a multiple of 128.  R is small and static here.
    TODO(synk): switch to jnp.reshape for large R once supported."""
    _, R, _ = x3.shape
    if R == 1:
        return x3[:, 0, :]
    return jnp.concatenate([x3[:, i, :] for i in range(R)], axis=-1)


def _focused_attn_kernel(q_ref, k_ref, v_ref, wk_ref, wv_ref, wp_ref, bp_ref,
                         mask_ref, x_ref, w_ref, *, num_heads, scale):
    """One grid step == `Bt` batch elements; all heads handled in-kernel."""
    Bt, N_q, C = q_ref.shape
    _, N_kv, _ = k_ref.shape
    H = num_heads
    hd = C // H

    # Flatten batch into rows (leading-dim merges are layout-cheap).
    q2 = q_ref[...].reshape(Bt * N_q, C)
    k2 = k_ref[...].reshape(Bt * N_kv, C)
    v2 = v_ref[...].reshape(Bt * N_kv, C)
    wk = wk_ref[...]                                   # (C, C) == k_proj.weight.T
    wv = wv_ref[...]                                   # (C, C) == v_proj.weight.T
    wp = wp_ref[...]                                   # (C, C) == proj.weight.T

    # Separate q / k projections (both use k_proj -- faithful PyTorch quirk).
    # No concat/split copies: the MXU is nowhere near saturated at this C and
    # the copies cost more than one fused dispatch saves.
    qp = (jnp.dot(q2, wk, preferred_element_type=jnp.float32) * scale
          ).reshape(Bt, N_q, C)
    kp = jnp.dot(k2, wk, preferred_element_type=jnp.float32).reshape(Bt, N_kv, C)
    vp = jnp.dot(v2, wv, preferred_element_type=jnp.float32).reshape(Bt, N_kv, C)

    # Additive mask precomputed in the wrapper (-1e30 where masked); broadcast
    # over Bt happens implicitly inside the VPU add (no materialized temp).
    m = mask_ref[...].astype(jnp.float32)[None, :, :]

    x_acc = jnp.zeros((Bt * N_q, C), jnp.float32)
    for h in range(H):                                  # small static unroll
        lo = h * hd
        qh = qp[:, :, lo:lo + hd]                       # (Bt, N_q, hd)
        kh = kp[:, :, lo:lo + hd]                       # (Bt, N_kv, hd)
        vh = vp[:, :, lo:lo + hd]                       # (Bt, N_kv, hd)

        s = jnp.einsum('bqd,bkd->bqk', qh, kh,
                       preferred_element_type=jnp.float32) + m
        amax = jnp.max(s, axis=-1, keepdims=True)
        ex = jnp.exp(s - amax)
        denom = jnp.sum(ex, axis=-1, keepdims=True)
        attn = ex / denom                               # exact: returned weights

        # Lane-dense slab store of this head's weights (no w_heads list, no
        # final lane concat across heads): (Bt, N_q*N_kv) per head.
        w_ref[:, h, :] = _rows_to_lanes(attn).astype(w_ref.dtype)

        oh = jnp.einsum('bqk,bkd->bqd', attn, vh,
                        preferred_element_type=jnp.float32)  # (Bt, N_q, hd)
        # Fold head-concat + output projection into an accumulation:
        #   concat_h(oh) @ Wp == sum_h oh @ Wp[h*hd:(h+1)*hd, :]
        x_acc = x_acc + jnp.dot(oh.reshape(Bt * N_q, hd), wp[lo:lo + hd, :],
                                preferred_element_type=jnp.float32)

    x = x_acc + bp_ref[...]                             # proj bias (1, C)
    # Lane-dense store of x as (Bt, N_q*C); wrapper reshapes to (B, N_q, C).
    x_ref[...] = _rows_to_lanes(x.reshape(Bt, N_q, C)).astype(x_ref.dtype)


def _vmem_block_bytes(Bt, N_q, N_kv, C, H, in_bytes, w_bytes, x_bytes):
    """Rough per-grid-step VMEM footprint (double-buffered blocks + temps)."""
    stream = Bt * (N_q + 2 * N_kv) * C * in_bytes        # q, k, v blocks
    stream += Bt * N_q * C * x_bytes                     # x output block
    stream += Bt * H * N_q * N_kv * w_bytes              # weights output block
    const = (3 * C * C + C) * in_bytes + N_q * N_kv * 4  # Wk/Wv/Wp, bias, mask
    temps = Bt * (N_q + 2 * N_kv) * C * 4                # f32 projections
    temps += 3 * Bt * N_q * N_kv * 4                     # s / exp / attn (live)
    temps += Bt * N_q * C * 4                            # x accumulator
    return 2 * (stream + const) + temps


def _vmem_budget_bytes():
    """Generation-aware VMEM budget (v7x has 64 MiB, v5e/v6e 128 MiB)."""
    cap = 64 * 1024 * 1024                               # assume smallest (v7x)
    try:
        cap = getattr(pltpu.get_tpu_info(), "vmem_capacity_bytes", cap)
    except Exception:
        pass
    return int(0.4 * cap)


def _pick_block_b(B, N_q, N_kv, C, H, in_bytes, w_bytes, x_bytes, budget):
    """Largest Bt dividing B that fits the VMEM budget.  Bt must be == B or a
    multiple of 8 so the 2-D lane-dense x-output block stays sublane-legal."""
    cands = sorted(d for d in range(1, B + 1)
                   if B % d == 0 and (d == B or d % 8 == 0))
    best = cands[0]
    for d in cands:
        if _vmem_block_bytes(d, N_q, N_kv, C, H, in_bytes, w_bytes, x_bytes) <= budget:
            best = d
    # TODO(synk): if even the smallest Bt exceeds the budget, tile N_q / N_kv
    # (second grid axis + online softmax) instead of shrinking Bt further.
    return best


def focused_attn(q, k, v, mask, wk_t, wv_t, wp_t, bp, *, num_heads,
                 block_b=None, weights_dtype=jnp.float32, compute_dtype=None):
    """q: (B, N_q, C); k, v: (B, N_kv, C); mask: (N_q, N_kv) (broadcast B, H).
    wk_t/wv_t/wp_t: (C, C) transposed Linear weights; bp: (1, C) proj bias.
    compute_dtype: optional (e.g. jnp.bfloat16, recommended on v5e) cast for
    q/k/v and the weight matrices; accumulation stays f32.
    weights_dtype: dtype of the returned attention weights (bf16 opt-in halves
    the dominant HBM write at the cost of precision vs. the PyTorch reference).
    """
    B, N_q, C = q.shape
    _, N_kv, _ = k.shape
    H = num_heads
    hd = C // H
    scale = hd ** (-0.5)
    out_dtype = q.dtype

    if compute_dtype is not None:
        q, k, v = (t.astype(compute_dtype) for t in (q, k, v))
        wk_t, wv_t, wp_t = (t.astype(compute_dtype) for t in (wk_t, wv_t, wp_t))

    # Hoist mask preprocessing out of the kernel; a large finite negative gives
    # exactly-zero masked weights after exp.  NOTE: fully-masked rows produce
    # uniform weights here rather than NaN as in PyTorch (intentional).
    add_mask = jnp.where(mask > 0, jnp.float32(-1e30), mask.astype(jnp.float32))

    in_bytes = jnp.dtype(q.dtype).itemsize
    w_bytes = jnp.dtype(weights_dtype).itemsize
    x_bytes = jnp.dtype(out_dtype).itemsize

    budget = _vmem_budget_bytes()
    if block_b is None:
        Bt = _pick_block_b(B, N_q, N_kv, C, H, in_bytes, w_bytes, x_bytes, budget)
    else:
        Bt = block_b
        assert Bt == B or Bt % 8 == 0, "block_b must be B or a multiple of 8"
    assert B % Bt == 0, "block_b must divide B"

    est = _vmem_block_bytes(Bt, N_q, N_kv, C, H, in_bytes, w_bytes, x_bytes)
    vmem_limit = int(min(48 * 1024 * 1024, max(16 * 1024 * 1024, 2 * est)))

    kernel = functools.partial(_focused_attn_kernel,
                               num_heads=num_heads, scale=scale)

    out_shapes = (
        jax.ShapeDtypeStruct((B, N_q * C), out_dtype),                # lane-dense x
        jax.ShapeDtypeStruct((B, H, N_q * N_kv), weights_dtype),      # lane-dense w
    )

    x_flat, w_flat = pl.pallas_call(
        kernel,
        out_shape=out_shapes,
        grid_spec=pltpu.PrefetchScalarGridSpec(
            num_scalar_prefetch=0,
            grid=(B // Bt,),
            in_specs=[
                pl.BlockSpec((Bt, N_q, C), lambda b: (b, 0, 0)),      # q
                pl.BlockSpec((Bt, N_kv, C), lambda b: (b, 0, 0)),     # k
                pl.BlockSpec((Bt, N_kv, C), lambda b: (b, 0, 0)),     # v
                pl.BlockSpec((C, C), lambda b: (0, 0)),               # Wk^T
                pl.BlockSpec((C, C), lambda b: (0, 0)),               # Wv^T
                pl.BlockSpec((C, C), lambda b: (0, 0)),               # Wproj^T
                pl.BlockSpec((1, C), lambda b: (0, 0)),               # proj bias
                pl.BlockSpec((N_q, N_kv), lambda b: (0, 0)),          # additive mask
            ],
            out_specs=[
                pl.BlockSpec((Bt, N_q * C), lambda b: (b, 0)),        # x (flat)
                pl.BlockSpec((Bt, H, N_q * N_kv), lambda b: (b, 0, 0)),  # weights
            ],
        ),
        compiler_params=pltpu.CompilerParams(
            dimension_semantics=("parallel",),
            vmem_limit_bytes=vmem_limit),
    )(q, k, v, wk_t, wv_t, wp_t, bp, add_mask)

    # Pure reshapes (no transpose) outside the kernel.
    x = x_flat.reshape(B, N_q, C)
    weights = w_flat.reshape(B, H, N_q, N_kv)
    return x, weights


def _reference(q, k, v, mask, wk_t, wv_t, wp_t, bp, num_heads):
    """Pure-JAX mirror of the PyTorch forward (for correctness check)."""
    B, N_q, C = q.shape
    _, N_kv, _ = k.shape
    hd = C // num_heads
    scale = hd ** (-0.5)
    kp = (k @ wk_t).reshape(B, N_kv, num_heads, hd)
    vp = (v @ wv_t).reshape(B, N_kv, num_heads, hd)
    qp = (q @ wk_t).reshape(B, N_q, num_heads, hd) * scale  # q uses k_proj (quirk)
    attn = jnp.einsum('bqhd,bkhd->bhqk', qp, kp)
    m = jnp.where(mask > 0, -jnp.inf, mask)
    attn = attn + m[None, None]
    attn = jax.nn.softmax(attn, axis=-1)
    x = jnp.einsum('bhqk,bkhd->bqhd', attn, vp).reshape(B, N_q, C)
    x = x @ wp_t + bp
    return x, attn


if __name__ == "__main__":
    # Small shapes consistent with the module: dim=32, num_heads=4
    B, N_q, N_kv, C, H = 2, 8, 16, 32, 4

    key = jax.random.PRNGKey(0)
    k_q, k_k, k_v, k_wk, k_wv, k_wp, k_bp, k_m = jax.random.split(key, 8)

    q = jax.random.normal(k_q, (B, N_q, C), dtype=jnp.float32)
    k = jax.random.normal(k_k, (B, N_kv, C), dtype=jnp.float32)
    v = jax.random.normal(k_v, (B, N_kv, C), dtype=jnp.float32)

    # nn.Linear weights are (out, in); pass transposed (in, out).
    wk_t = jax.random.normal(k_wk, (C, C), dtype=jnp.float32) * 0.02
    wv_t = jax.random.normal(k_wv, (C, C), dtype=jnp.float32) * 0.02
    wp_t = jax.random.normal(k_wp, (C, C), dtype=jnp.float32) * 0.02
    bp = jax.random.normal(k_bp, (1, C), dtype=jnp.float32) * 0.02

    # Focused-decoder style attention mask: entries > 0 become -inf additive.
    mask = (jax.random.uniform(k_m, (N_q, N_kv)) > 0.7).astype(jnp.float32)
    # Make sure no row is fully masked (would produce NaNs, same as PyTorch).
    mask = mask.at[:, 0].set(0.0)

    # TODO(synk): use_pos_bias=True path (learned pos_bias add) not exercised;
    # dropout layers are identity at p=0 / eval.

    x_out, weights = focused_attn(q, k, v, mask, wk_t, wv_t, wp_t, bp,
                                  num_heads=H)
    jax.block_until_ready((x_out, weights))

    x_ref, w_ref = _reference(q, k, v, mask, wk_t, wv_t, wp_t, bp, H)
    # Tolerance dominated by default-precision MXU matmuls (softmax is exact).
    assert jnp.allclose(x_out, x_ref, atol=2e-3, rtol=2e-3)
    assert jnp.allclose(weights, w_ref, atol=2e-3, rtol=2e-3)

    print("KERNEL_OK")
</pallas_src>

<mosaic_0001>
module attributes {stable_mosaic.version = 11 : i64} {
  func.func @_focused_attn_kernel(%arg0: i32, %arg1: memref<2x8x32xf32, #tpu.memory_space<vmem>>, %arg2: memref<2x16x32xf32, #tpu.memory_space<vmem>>, %arg3: memref<2x16x32xf32, #tpu.memory_space<vmem>>, %arg4: memref<32x32xf32, #tpu.memory_space<vmem>>, %arg5: memref<32x32xf32, #tpu.memory_space<vmem>>, %arg6: memref<32x32xf32, #tpu.memory_space<vmem>>, %arg7: memref<1x32xf32, #tpu.memory_space<vmem>>, %arg8: memref<8x16xf32, #tpu.memory_space<vmem>>, %arg9: memref<2x256xf32, #tpu.memory_space<vmem>>, %arg10: memref<2x4x128xf32, #tpu.memory_space<vmem>>) attributes {dimension_semantics = [#tpu.dimension_semantics<parallel>], iteration_bounds = array<i64: 1>, scalar_prefetch = 0 : i64, scratch_operands = 0 : i64, tpu.core_type = #tpu.core_type<tc>, window_params = [{transform_indices = @transform_0, window_bounds = array<i64: 2, 8, 32>}, {transform_indices = @transform_1, window_bounds = array<i64: 2, 16, 32>}, {transform_indices = @transform_2, window_bounds = array<i64: 2, 16, 32>}, {pipeline_mode = #tpu.pipeline_mode<synchronous>, transform_indices = @transform_3, window_bounds = array<i64: 32, 32>}, {pipeline_mode = #tpu.pipeline_mode<synchronous>, transform_indices = @transform_4, window_bounds = array<i64: 32, 32>}, {pipeline_mode = #tpu.pipeline_mode<synchronous>, transform_indices = @transform_5, window_bounds = array<i64: 32, 32>}, {pipeline_mode = #tpu.pipeline_mode<synchronous>, transform_indices = @transform_6, window_bounds = array<i64: 1, 32>}, {pipeline_mode = #tpu.pipeline_mode<synchronous>, transform_indices = @transform_7, window_bounds = array<i64: 8, 16>}, {transform_indices = @transform_8, window_bounds = array<i64: 2, 256>}, {transform_indices = @transform_9, window_bounds = array<i64: 2, 4, 128>}]} {
    %c0 = arith.constant 0 : index
    %c0_0 = arith.constant 0 : index
    %c0_1 = arith.constant 0 : index
    %0 = vector.load %arg1[%c0, %c0_0, %c0_1] : memref<2x8x32xf32, #tpu.memory_space<vmem>>, vector<2x8x32xf32>
    %1 = vector.shape_cast %0 : vector<2x8x32xf32> to vector<16x32xf32>
    %c0_2 = arith.constant 0 : index
    %c0_3 = arith.constant 0 : index
    %c0_4 = arith.constant 0 : index
    %2 = vector.load %arg2[%c0_2, %c0_3, %c0_4] : memref<2x16x32xf32, #tpu.memory_space<vmem>>, vector<2x16x32xf32>
    %3 = vector.shape_cast %2 : vector<2x16x32xf32> to vector<32x32xf32>
    %c0_5 = arith.constant 0 : index
    %c0_6 = arith.constant 0 : index
    %c0_7 = arith.constant 0 : index
    %4 = vector.load %arg3[%c0_5, %c0_6, %c0_7] : memref<2x16x32xf32, #tpu.memory_space<vmem>>, vector<2x16x32xf32>
    %5 = vector.shape_cast %4 : vector<2x16x32xf32> to vector<32x32xf32>
    %c0_8 = arith.constant 0 : index
    %c0_9 = arith.constant 0 : index
    %6 = vector.load %arg4[%c0_8, %c0_9] : memref<32x32xf32, #tpu.memory_space<vmem>>, vector<32x32xf32>
    %c0_10 = arith.constant 0 : index
    %c0_11 = arith.constant 0 : index
    %7 = vector.load %arg5[%c0_10, %c0_11] : memref<32x32xf32, #tpu.memory_space<vmem>>, vector<32x32xf32>
    %c0_12 = arith.constant 0 : index
    %c0_13 = arith.constant 0 : index
    %8 = vector.load %arg6[%c0_12, %c0_13] : memref<32x32xf32, #tpu.memory_space<vmem>>, vector<32x32xf32>
    %cst = arith.constant dense<0.000000e+00> : vector<16x32xf32>
    %9 = tpu.matmul %1, %6, %cst {dimension_numbers = #tpu.dot_dimension_numbers<[1], [0], [0], [1], [0, 0, 1, 1], [], []>} : vector<16x32xf32>, vector<32x32xf32>, vector<16x32xf32> -> vector<16x32xf32>
    %cst_14 = arith.constant 0.353553385 : f32
    %10 = vector.broadcast %cst_14 : f32 to vector<16x32xf32>
    %11 = arith.mulf %9, %10 : vector<16x32xf32>
    %12 = vector.shape_cast %11 : vector<16x32xf32> to vector<2x8x32xf32>
    %cst_15 = arith.constant dense<0.000000e+00> : vector<32x32xf32>
    %13 = tpu.matmul %3, %6, %cst_15 {dimension_numbers = #tpu.dot_dimension_numbers<[1], [0], [0], [1], [0, 0, 1, 1], [], []>} : vector<32x32xf32>, vector<32x32xf32>, vector<32x32xf32> -> vector<32x32xf32>
    %14 = vector.shape_cast %13 : vector<32x32xf32> to vector<2x16x32xf32>
    %cst_16 = arith.constant dense<0.000000e+00> : vector<32x32xf32>
    %15 = tpu.matmul %5, %7, %cst_16 {dimension_numbers = #tpu.dot_dimension_numbers<[1], [0], [0], [1], [0, 0, 1, 1], [], []>} : vector<32x32xf32>, vector<32x32xf32>, vector<32x32xf32> -> vector<32x32xf32>
    %16 = vector.shape_cast %15 : vector<32x32xf32> to vector<2x16x32xf32>
    %c0_17 = arith.constant 0 : index
    %c0_18 = arith.constant 0 : index
    %17 = vector.load %arg8[%c0_17, %c0_18] : memref<8x16xf32, #tpu.memory_space<vmem>>, vector<8x16xf32>
    %18 = vector.shape_cast %17 : vector<8x16xf32> to vector<1x8x16xf32>
    %cst_19 = arith.constant 0.000000e+00 : f32
    %19 = vector.broadcast %cst_19 : f32 to vector<16x32xf32>
    %20 = vector.extract_strided_slice %12 {offsets = [0, 0, 0], sizes = [2, 8, 8], strides = [1, 1, 1]} : vector<2x8x32xf32> to vector<2x8x8xf32>
    %21 = vector.extract_strided_slice %14 {offsets = [0, 0, 0], sizes = [2, 16, 8], strides = [1, 1, 1]} : vector<2x16x32xf32> to vector<2x16x8xf32>
    %22 = vector.extract_strided_slice %16 {offsets = [0, 0, 0], sizes = [2, 16, 8], strides = [1, 1, 1]} : vector<2x16x32xf32> to vector<2x16x8xf32>
    "tpu.trace_start"() <{level = 10 : i32, message = "bqd,bkd->bqk"}> : () -> ()
    %cst_20 = arith.constant dense<0.000000e+00> : vector<2x8x16xf32>
    %23 = tpu.matmul %20, %21, %cst_20 {dimension_numbers = #tpu.dot_dimension_numbers<[2], [2], [1], [1], [0, 0, 0, 1, 1, 1], [0], [0]>} : vector<2x8x8xf32>, vector<2x16x8xf32>, vector<2x8x16xf32> -> vector<2x8x16xf32>
    "tpu.trace_stop"() : () -> ()
    %24 = vector.broadcast %18 : vector<1x8x16xf32> to vector<2x8x16xf32>
    %25 = arith.addf %23, %24 : vector<2x8x16xf32>
    %cst_21 = arith.constant dense<0xFF800000> : vector<2x8xf32>
    %26 = vector.multi_reduction <maximumf>, %25, %cst_21 [2] : vector<2x8x16xf32> to vector<2x8xf32>
    %27 = vector.shape_cast %26 : vector<2x8xf32> to vector<2x8x1xf32>
    %28 = vector.broadcast %27 : vector<2x8x1xf32> to vector<2x8x16xf32>
    %29 = arith.subf %25, %28 : vector<2x8x16xf32>
    %30 = math.exp %29 : vector<2x8x16xf32>
    %cst_22 = arith.constant dense<0.000000e+00> : vector<2x8xf32>
    %31 = vector.multi_reduction <add>, %30, %cst_22 [2] : vector<2x8x16xf32> to vector<2x8xf32>
    %32 = vector.shape_cast %31 : vector<2x8xf32> to vector<2x8x1xf32>
    %33 = vector.broadcast %32 : vector<2x8x1xf32> to vector<2x8x16xf32>
    %34 = arith.divf %30, %33 : vector<2x8x16xf32>
    %35 = vector.extract_strided_slice %34 {offsets = [0, 0, 0], sizes = [2, 1, 16], strides = [1, 1, 1]} : vector<2x8x16xf32> to vector<2x1x16xf32>
    %36 = vector.shape_cast %35 : vector<2x1x16xf32> to vector<2x16xf32>
    %37 = vector.extract_strided_slice %34 {offsets = [0, 1, 0], sizes = [2, 1, 16], strides = [1, 1, 1]} : vector<2x8x16xf32> to vector<2x1x16xf32>
    %38 = vector.shape_cast %37 : vector<2x1x16xf32> to vector<2x16xf32>
    %39 = vector.extract_strided_slice %34 {offsets = [0, 2, 0], sizes = [2, 1, 16], strides = [1, 1, 1]} : vector<2x8x16xf32> to vector<2x1x16xf32>
    %40 = vector.shape_cast %39 : vector<2x1x16xf32> to vector<2x16xf32>
    %41 = vector.extract_strided_slice %34 {offsets = [0, 3, 0], sizes = [2, 1, 16], strides = [1, 1, 1]} : vector<2x8x16xf32> to vector<2x1x16xf32>
    %42 = vector.shape_cast %41 : vector<2x1x16xf32> to vector<2x16xf32>
    %43 = vector.extract_strided_slice %34 {offsets = [0, 4, 0], sizes = [2, 1, 16], strides = [1, 1, 1]} : vector<2x8x16xf32> to vector<2x1x16xf32>
    %44 = vector.shape_cast %43 : vector<2x1x16xf32> to vector<2x16xf32>
    %45 = vector.extract_strided_slice %34 {offsets = [0, 5, 0], sizes = [2, 1, 16], strides = [1, 1, 1]} : vector<2x8x16xf32> to vector<2x1x16xf32>
    %46 = vector.shape_cast %45 : vector<2x1x16xf32> to vector<2x16xf32>
    %47 = vector.extract_strided_slice %34 {offsets = [0, 6, 0], sizes = [2, 1, 16], strides = [1, 1, 1]} : vector<2x8x16xf32> to vector<2x1x16xf32>
    %48 = vector.shape_cast %47 : vector<2x1x16xf32> to vector<2x16xf32>
    %49 = vector.extract_strided_slice %34 {offsets = [0, 7, 0], sizes = [2, 1, 16], strides = [1, 1, 1]} : vector<2x8x16xf32> to vector<2x1x16xf32>
    %50 = vector.shape_cast %49 : vector<2x1x16xf32> to vector<2x16xf32>
    %51 = tpu.concatenate %36, %38, %40, %42, %44, %46, %48, %50 in 1 : vector<2x16xf32>, vector<2x16xf32>, vector<2x16xf32>, vector<2x16xf32>, vector<2x16xf32>, vector<2x16xf32>, vector<2x16xf32>, vector<2x16xf32> -> vector<2x128xf32>
    %c0_23 = arith.constant 0 : index
    %c0_24 = arith.constant 0 : index
    %c0_25 = arith.constant 0 : index
    %52 = vector.load %arg10[%c0_23, %c0_24, %c0_25] : memref<2x4x128xf32, #tpu.memory_space<vmem>>, vector<2x1x128xf32>
    %53 = vector.shape_cast %52 : vector<2x1x128xf32> to vector<2x128xf32>
    %54 = vector.shape_cast %51 : vector<2x128xf32> to vector<2x1x128xf32>
    tpu.vector_store %arg10[%c0_23, %c0_24, %c0_25], %54 {strides = array<i32>} : memref<2x4x128xf32, #tpu.memory_space<vmem>>, vector<2x1x128xf32>,
    "tpu.trace_start"() <{level = 10 : i32, message = "bqk,bkd->bqd"}> : () -> ()
    %cst_26 = arith.constant dense<0.000000e+00> : vector<2x8x8xf32>
    %55 = tpu.matmul %34, %22, %cst_26 {dimension_numbers = #tpu.dot_dimension_numbers<[2], [1], [1], [2], [0, 0, 0, 1, 1, 2], [0], [0]>} : vector<2x8x16xf32>, vector<2x16x8xf32>, vector<2x8x8xf32> -> vector<2x8x8xf32>
    "tpu.trace_stop"() : () -> ()
    %56 = vector.shape_cast %55 : vector<2x8x8xf32> to vector<16x8xf32>
    %57 = vector.extract_strided_slice %8 {offsets = [0, 0], sizes = [8, 32], strides = [1, 1]} : vector<32x32xf32> to vector<8x32xf32>
    %cst_27 = arith.constant dense<0.000000e+00> : vector<16x32xf32>
    %58 = tpu.matmul %56, %57, %cst_27 {dimension_numbers = #tpu.dot_dimension_numbers<[1], [0], [0], [1], [0, 0, 1, 1], [], []>} : vector<16x8xf32>, vector<8x32xf32>, vector<16x32xf32> -> vector<16x32xf32>
    %59 = arith.addf %19, %58 : vector<16x32xf32>
    %60 = vector.extract_strided_slice %12 {offsets = [0, 0, 8], sizes = [2, 8, 8], strides = [1, 1, 1]} : vector<2x8x32xf32> to vector<2x8x8xf32>
    %61 = vector.extract_strided_slice %14 {offsets = [0, 0, 8], sizes = [2, 16, 8], strides = [1, 1, 1]} : vector<2x16x32xf32> to vector<2x16x8xf32>
    %62 = vector.extract_strided_slice %16 {offsets = [0, 0, 8], sizes = [2, 16, 8], strides = [1, 1, 1]} : vector<2x16x32xf32> to vector<2x16x8xf32>
    "tpu.trace_start"() <{level = 10 : i32, message = "bqd,bkd->bqk"}> : () -> ()
    %cst_28 = arith.constant dense<0.000000e+00> : vector<2x8x16xf32>
    %63 = tpu.matmul %60, %61, %cst_28 {dimension_numbers = #tpu.dot_dimension_numbers<[2], [2], [1], [1], [0, 0, 0, 1, 1, 1], [0], [0]>} : vector<2x8x8xf32>, vector<2x16x8xf32>, vector<2x8x16xf32> -> vector<2x8x16xf32>
    "tpu.trace_stop"() : () -> ()
    %64 = vector.broadcast %18 : vector<1x8x16xf32> to vector<2x8x16xf32>
    %65 = arith.addf %63, %64 : vector<2x8x16xf32>
    %cst_29 = arith.constant dense<0xFF800000> : vector<2x8xf32>
    %66 = vector.multi_reduction <maximumf>, %65, %cst_29 [2] : vector<2x8x16xf32> to vector<2x8xf32>
    %67 = vector.shape_cast %66 : vector<2x8xf32> to vector<2x8x1xf32>
    %68 = vector.broadcast %67 : vector<2x8x1xf32> to vector<2x8x16xf32>
    %69 = arith.subf %65, %68 : vector<2x8x16xf32>
    %70 = math.exp %69 : vector<2x8x16xf32>
    %cst_30 = arith.constant dense<0.000000e+00> : vector<2x8xf32>
    %71 = vector.multi_reduction <add>, %70, %cst_30 [2] : vector<2x8x16xf32> to vector<2x8xf32>
    %72 = vector.shape_cast %71 : vector<2x8xf32> to vector<2x8x1xf32>
    %73 = vector.broadcast %72 : vector<2x8x1xf32> to vector<2x8x16xf32>
    %74 = arith.divf %70, %73 : vector<2x8x16xf32>
    %75 = vector.extract_strided_slice %74 {offsets = [0, 0, 0], sizes = [2, 1, 16], strides = [1, 1, 1]} : vector<2x8x16xf32> to vector<2x1x16xf32>
    %76 = vector.shape_cast %75 : vector<2x1x16xf32> to vector<2x16xf32>
    %77 = vector.extract_strided_slice %74 {offsets = [0, 1, 0], sizes = [2, 1, 16], strides = [1, 1, 1]} : vector<2x8x16xf32> to vector<2x1x16xf32>
    %78 = vector.shape_cast %77 : vector<2x1x16xf32> to vector<2x16xf32>
    %79 = vector.extract_strided_slice %74 {offsets = [0, 2, 0], sizes = [2, 1, 16], strides = [1, 1, 1]} : vector<2x8x16xf32> to vector<2x1x16xf32>
    %80 = vector.shape_cast %79 : vector<2x1x16xf32> to vector<2x16xf32>
    %81 = vector.extract_strided_slice %74 {offsets = [0, 3, 0], sizes = [2, 1, 16], strides = [1, 1, 1]} : vector<2x8x16xf32> to vector<2x1x16xf32>
    %82 = vector.shape_cast %81 : vector<2x1x16xf32> to vector<2x16xf32>
    %83 = vector.extract_strided_slice %74 {offsets = [0, 4, 0], sizes = [2, 1, 16], strides = [1, 1, 1]} : vector<2x8x16xf32> to vector<2x1x16xf32>
    %84 = vector.shape_cast %83 : vector<2x1x16xf32> to vector<2x16xf32>
    %85 = vector.extract_strided_slice %74 {offsets = [0, 5, 0], sizes = [2, 1, 16], strides = [1, 1, 1]} : vector<2x8x16xf32> to vector<2x1x16xf32>
    %86 = vector.shape_cast %85 : vector<2x1x16xf32> to vector<2x16xf32>
    %87 = vector.extract_strided_slice %74 {offsets = [0, 6, 0], sizes = [2, 1, 16], strides = [1, 1, 1]} : vector<2x8x16xf32> to vector<2x1x16xf32>
    %88 = vector.shape_cast %87 : vector<2x1x16xf32> to vector<2x16xf32>
    %89 = vector.extract_strided_slice %74 {offsets = [0, 7, 0], sizes = [2, 1, 16], strides = [1, 1, 1]} : vector<2x8x16xf32> to vector<2x1x16xf32>
    %90 = vector.shape_cast %89 : vector<2x1x16xf32> to vector<2x16xf32>
    %91 = tpu.concatenate %76, %78, %80, %82, %84, %86, %88, %90 in 1 : vector<2x16xf32>, vector<2x16xf32>, vector<2x16xf32>, vector<2x16xf32>, vector<2x16xf32>, vector<2x16xf32>, vector<2x16xf32>, vector<2x16xf32> -> vector<2x128xf32>
    %c0_31 = arith.constant 0 : index
    %c1 = arith.constant 1 : index
    %c0_32 = arith.constant 0 : index
    %92 = vector.load %arg10[%c0_31, %c1, %c0_32] : memref<2x4x128xf32, #tpu.memory_space<vmem>>, vector<2x1x128xf32>
    %93 = vector.shape_cast %92 : vector<2x1x128xf32> to vector<2x128xf32>
    %94 = vector.shape_cast %91 : vector<2x128xf32> to vector<2x1x128xf32>
    tpu.vector_store %arg10[%c0_31, %c1, %c0_32], %94 {strides = array<i32>} : memref<2x4x128xf32, #tpu.memory_space<vmem>>, vector<2x1x128xf32>,
    "tpu.trace_start"() <{level = 10 : i32, message = "bqk,bkd->bqd"}> : () -> ()
    %cst_33 = arith.constant dense<0.000000e+00> : vector<2x8x8xf32>
    %95 = tpu.matmul %74, %62, %cst_33 {dimension_numbers = #tpu.dot_dimension_numbers<[2], [1], [1], [2], [0, 0, 0, 1, 1, 2], [0], [0]>} : vector<2x8x16xf32>, vector<2x16x8xf32>, vector<2x8x8xf32> -> vector<2x8x8xf32>
    "tpu.trace_stop"() : () -> ()
    %96 = vector.shape_cast %95 : vector<2x8x8xf32> to vector<16x8xf32>
    %97 = vector.extract_strided_slice %8 {offsets = [8, 0], sizes = [8, 32], strides = [1, 1]} : vector<32x32xf32> to vector<8x32xf32>
    %cst_34 = arith.constant dense<0.000000e+00> : vector<16x32xf32>
    %98 = tpu.matmul %96, %97, %cst_34 {dimension_numbers = #tpu.dot_dimension_numbers<[1], [0], [0], [1], [0, 0, 1, 1], [], []>} : vector<16x8xf32>, vector<8x32xf32>, vector<16x32xf32> -> vector<16x32xf32>
    %99 = arith.addf %59, %98 : vector<16x32xf32>
    %100 = vector.extract_strided_slice %12 {offsets = [0, 0, 16], sizes = [2, 8, 8], strides = [1, 1, 1]} : vector<2x8x32xf32> to vector<2x8x8xf32>
    %101 = vector.extract_strided_slice %14 {offsets = [0, 0, 16], sizes = [2, 16, 8], strides = [1, 1, 1]} : vector<2x16x32xf32> to vector<2x16x8xf32>
    %102 = vector.extract_strided_slice %16 {offsets = [0, 0, 16], sizes = [2, 16, 8], strides = [1, 1, 1]} : vector<2x16x32xf32> to vector<2x16x8xf32>
    "tpu.trace_start"() <{level = 10 : i32, message = "bqd,bkd->bqk"}> : () -> ()
    %cst_35 = arith.constant dense<0.000000e+00> : vector<2x8x16xf32>
    %103 = tpu.matmul %100, %101, %cst_35 {dimension_numbers = #tpu.dot_dimension_numbers<[2], [2], [1], [1], [0, 0, 0, 1, 1, 1], [0], [0]>} : vector<2x8x8xf32>, vector<2x16x8xf32>, vector<2x8x16xf32> -> vector<2x8x16xf32>
    "tpu.trace_stop"() : () -> ()
    %104 = vector.broadcast %18 : vector<1x8x16xf32> to vector<2x8x16xf32>
    %105 = arith.addf %103, %104 : vector<2x8x16xf32>
    %cst_36 = arith.constant dense<0xFF800000> : vector<2x8xf32>
    %106 = vector.multi_reduction <maximumf>, %105, %cst_36 [2] : vector<2x8x16xf32> to vector<2x8xf32>
    %107 = vector.shape_cast %106 : vector<2x8xf32> to vector<2x8x1xf32>
    %108 = vector.broadcast %107 : vector<2x8x1xf32> to vector<2x8x16xf32>
    %109 = arith.subf %105, %108 : vector<2x8x16xf32>
    %110 = math.exp %109 : vector<2x8x16xf32>
    %cst_37 = arith.constant dense<0.000000e+00> : vector<2x8xf32>
    %111 = vector.multi_reduction <add>, %110, %cst_37 [2] : vector<2x8x16xf32> to vector<2x8xf32>
    %112 = vector.shape_cast %111 : vector<2x8xf32> to vector<2x8x1xf32>
    %113 = vector.broadcast %112 : vector<2x8x1xf32> to vector<2x8x16xf32>
    %114 = arith.divf %110, %113 : vector<2x8x16xf32>
    %115 = vector.extract_strided_slice %114 {offsets = [0, 0, 0], sizes = [2, 1, 16], strides = [1, 1, 1]} : vector<2x8x16xf32> to vector<2x1x16xf32>
    %116 = vector.shape_cast %115 : vector<2x1x16xf32> to vector<2x16xf32>
    %117 = vector.extract_strided_slice %114 {offsets = [0, 1, 0], sizes = [2, 1, 16], strides = [1, 1, 1]} : vector<2x8x16xf32> to vector<2x1x16xf32>
    %118 = vector.shape_cast %117 : vector<2x1x16xf32> to vector<2x16xf32>
    %119 = vector.extract_strided_slice %114 {offsets = [0, 2, 0], sizes = [2, 1, 16], strides = [1, 1, 1]} : vector<2x8x16xf32> to vector<2x1x16xf32>
    %120 = vector.shape_cast %119 : vector<2x1x16xf32> to vector<2x16xf32>
    %121 = vector.extract_strided_slice %114 {offsets = [0, 3, 0], sizes = [2, 1, 16], strides = [1, 1, 1]} : vector<2x8x16xf32> to vector<2x1x16xf32>
    %122 = vector.shape_cast %121 : vector<2x1x16xf32> to vector<2x16xf32>
    %123 = vector.extract_strided_slice %114 {offsets = [0, 4, 0], sizes = [2, 1, 16], strides = [1, 1, 1]} : vector<2x8x16xf32> to vector<2x1x16xf32>
    %124 = vector.shape_cast %123 : vector<2x1x16xf32> to vector<2x16xf32>
    %125 = vector.extract_strided_slice %114 {offsets = [0, 5, 0], sizes = [2, 1, 16], strides = [1, 1, 1]} : vector<2x8x16xf32> to vector<2x1x16xf32>
    %126 = vector.shape_cast %125 : vector<2x1x16xf32> to vector<2x16xf32>
    %127 = vector.extract_strided_slice %114 {offsets = [0, 6, 0], sizes = [2, 1, 16], strides = [1, 1, 1]} : vector<2x8x16xf32> to vector<2x1x16xf32>
    %128 = vector.shape_cast %127 : vector<2x1x16xf32> to vector<2x16xf32>
    %129 = vector.extract_strided_slice %114 {offsets = [0, 7, 0], sizes = [2, 1, 16], strides = [1, 1, 1]} : vector<2x8x16xf32> to vector<2x1x16xf32>
    %130 = vector.shape_cast %129 : vector<2x1x16xf32> to vector<2x16xf32>
    %131 = tpu.concatenate %116, %118, %120, %122, %124, %126, %128, %130 in 1 : vector<2x16xf32>, vector<2x16xf32>, vector<2x16xf32>, vector<2x16xf32>, vector<2x16xf32>, vector<2x16xf32>, vector<2x16xf32>, vector<2x16xf32> -> vector<2x128xf32>
    %c0_38 = arith.constant 0 : index
    %c2 = arith.constant 2 : index
    %c0_39 = arith.constant 0 : index
    %132 = vector.load %arg10[%c0_38, %c2, %c0_39] : memref<2x4x128xf32, #tpu.memory_space<vmem>>, vector<2x1x128xf32>
    %133 = vector.shape_cast %132 : vector<2x1x128xf32> to vector<2x128xf32>
    %134 = vector.shape_cast %131 : vector<2x128xf32> to vector<2x1x128xf32>
    tpu.vector_store %arg10[%c0_38, %c2, %c0_39], %134 {strides = array<i32>} : memref<2x4x128xf32, #tpu.memory_space<vmem>>, vector<2x1x128xf32>,
    "tpu.trace_start"() <{level = 10 : i32, message = "bqk,bkd->bqd"}> : () -> ()
    %cst_40 = arith.constant dense<0.000000e+00> : vector<2x8x8xf32>
    %135 = tpu.matmul %114, %102, %cst_40 {dimension_numbers = #tpu.dot_dimension_numbers<[2], [1], [1], [2], [0, 0, 0, 1, 1, 2], [0], [0]>} : vector<2x8x16xf32>, vector<2x16x8xf32>, vector<2x8x8xf32> -> vector<2x8x8xf32>
    "tpu.trace_stop"() : () -> ()
    %136 = vector.shape_cast %135 : vector<2x8x8xf32> to vector<16x8xf32>
    %137 = vector.extract_strided_slice %8 {offsets = [16, 0], sizes = [8, 32], strides = [1, 1]} : vector<32x32xf32> to vector<8x32xf32>
    %cst_41 = arith.constant dense<0.000000e+00> : vector<16x32xf32>
    %138 = tpu.matmul %136, %137, %cst_41 {dimension_numbers = #tpu.dot_dimension_numbers<[1], [0], [0], [1], [0, 0, 1, 1], [], []>} : vector<16x8xf32>, vector<8x32xf32>, vector<16x32xf32> -> vector<16x32xf32>
    %139 = arith.addf %99, %138 : vector<16x32xf32>
    %140 = vector.extract_strided_slice %12 {offsets = [0, 0, 24], sizes = [2, 8, 8], strides = [1, 1, 1]} : vector<2x8x32xf32> to vector<2x8x8xf32>
    %141 = vector.extract_strided_slice %14 {offsets = [0, 0, 24], sizes = [2, 16, 8], strides = [1, 1, 1]} : vector<2x16x32xf32> to vector<2x16x8xf32>
    %142 = vector.extract_strided_slice %16 {offsets = [0, 0, 24], sizes = [2, 16, 8], strides = [1, 1, 1]} : vector<2x16x32xf32> to vector<2x16x8xf32>
    "tpu.trace_start"() <{level = 10 : i32, message = "bqd,bkd->bqk"}> : () -> ()
    %cst_42 = arith.constant dense<0.000000e+00> : vector<2x8x16xf32>
    %143 = tpu.matmul %140, %141, %cst_42 {dimension_numbers = #tpu.dot_dimension_numbers<[2], [2], [1], [1], [0, 0, 0, 1, 1, 1], [0], [0]>} : vector<2x8x8xf32>, vector<2x16x8xf32>, vector<2x8x16xf32> -> vector<2x8x16xf32>
    "tpu.trace_stop"() : () -> ()
    %144 = vector.broadcast %18 : vector<1x8x16xf32> to vector<2x8x16xf32>
    %145 = arith.addf %143, %144 : vector<2x8x16xf32>
    %cst_43 = arith.constant dense<0xFF800000> : vector<2x8xf32>
    %146 = vector.multi_reduction <maximumf>, %145, %cst_43 [2] : vector<2x8x16xf32> to vector<2x8xf32>
    %147 = vector.shape_cast %146 : vector<2x8xf32> to vector<2x8x1xf32>
    %148 = vector.broadcast %147 : vector<2x8x1xf32> to vector<2x8x16xf32>
    %149 = arith.subf %145, %148 : vector<2x8x16xf32>
    %150 = math.exp %149 : vector<2x8x16xf32>
    %cst_44 = arith.constant dense<0.000000e+00> : vector<2x8xf32>
    %151 = vector.multi_reduction <add>, %150, %cst_44 [2] : vector<2x8x16xf32> to vector<2x8xf32>
    %152 = vector.shape_cast %151 : vector<2x8xf32> to vector<2x8x1xf32>
    %153 = vector.broadcast %152 : vector<2x8x1xf32> to vector<2x8x16xf32>
    %154 = arith.divf %150, %153 : vector<2x8x16xf32>
    %155 = vector.extract_strided_slice %154 {offsets = [0, 0, 0], sizes = [2, 1, 16], strides = [1, 1, 1]} : vector<2x8x16xf32> to vector<2x1x16xf32>
    %156 = vector.shape_cast %155 : vector<2x1x16xf32> to vector<2x16xf32>
    %157 = vector.extract_strided_slice %154 {offsets = [0, 1, 0], sizes = [2, 1, 16], strides = [1, 1, 1]} : vector<2x8x16xf32> to vector<2x1x16xf32>
    %158 = vector.shape_cast %157 : vector<2x1x16xf32> to vector<2x16xf32>
    %159 = vector.extract_strided_slice %154 {offsets = [0, 2, 0], sizes = [2, 1, 16], strides = [1, 1, 1]} : vector<2x8x16xf32> to vector<2x1x16xf32>
    %160 = vector.shape_cast %159 : vector<2x1x16xf32> to vector<2x16xf32>
    %161 = vector.extract_strided_slice %154 {offsets = [0, 3, 0], sizes = [2, 1, 16], strides = [1, 1, 1]} : vector<2x8x16xf32> to vector<2x1x16xf32>
    %162 = vector.shape_cast %161 : vector<2x1x16xf32> to vector<2x16xf32>
    %163 = vector.extract_strided_slice %154 {offsets = [0, 4, 0], sizes = [2, 1, 16], strides = [1, 1, 1]} : vector<2x8x16xf32> to vector<2x1x16xf32>
    %164 = vector.shape_cast %163 : vector<2x1x16xf32> to vector<2x16xf32>
    %165 = vector.extract_strided_slice %154 {offsets = [0, 5, 0], sizes = [2, 1, 16], strides = [1, 1, 1]} : vector<2x8x16xf32> to vector<2x1x16xf32>
    %166 = vector.shape_cast %165 : vector<2x1x16xf32> to vector<2x16xf32>
    %167 = vector.extract_strided_slice %154 {offsets = [0, 6, 0], sizes = [2, 1, 16], strides = [1, 1, 1]} : vector<2x8x16xf32> to vector<2x1x16xf32>
    %168 = vector.shape_cast %167 : vector<2x1x16xf32> to vector<2x16xf32>
    %169 = vector.extract_strided_slice %154 {offsets = [0, 7, 0], sizes = [2, 1, 16], strides = [1, 1, 1]} : vector<2x8x16xf32> to vector<2x1x16xf32>
    %170 = vector.shape_cast %169 : vector<2x1x16xf32> to vector<2x16xf32>
    %171 = tpu.concatenate %156, %158, %160, %162, %164, %166, %168, %170 in 1 : vector<2x16xf32>, vector<2x16xf32>, vector<2x16xf32>, vector<2x16xf32>, vector<2x16xf32>, vector<2x16xf32>, vector<2x16xf32>, vector<2x16xf32> -> vector<2x128xf32>
    %c0_45 = arith.constant 0 : index
    %c3 = arith.constant 3 : index
    %c0_46 = arith.constant 0 : index
    %172 = vector.load %arg10[%c0_45, %c3, %c0_46] : memref<2x4x128xf32, #tpu.memory_space<vmem>>, vector<2x1x128xf32>
    %173 = vector.shape_cast %172 : vector<2x1x128xf32> to vector<2x128xf32>
    %174 = vector.shape_cast %171 : vector<2x128xf32> to vector<2x1x128xf32>
    tpu.vector_store %arg10[%c0_45, %c3, %c0_46], %174 {strides = array<i32>} : memref<2x4x128xf32, #tpu.memory_space<vmem>>, vector<2x1x128xf32>,
    "tpu.trace_start"() <{level = 10 : i32, message = "bqk,bkd->bqd"}> : () -> ()
    %cst_47 = arith.constant dense<0.000000e+00> : vector<2x8x8xf32>
    %175 = tpu.matmul %154, %142, %cst_47 {dimension_numbers = #tpu.dot_dimension_numbers<[2], [1], [1], [2], [0, 0, 0, 1, 1, 2], [0], [0]>} : vector<2x8x16xf32>, vector<2x16x8xf32>, vector<2x8x8xf32> -> vector<2x8x8xf32>
    "tpu.trace_stop"() : () -> ()
    %176 = vector.shape_cast %175 : vector<2x8x8xf32> to vector<16x8xf32>
    %177 = vector.extract_strided_slice %8 {offsets = [24, 0], sizes = [8, 32], strides = [1, 1]} : vector<32x32xf32> to vector<8x32xf32>
    %cst_48 = arith.constant dense<0.000000e+00> : vector<16x32xf32>
    %178 = tpu.matmul %176, %177, %cst_48 {dimension_numbers = #tpu.dot_dimension_numbers<[1], [0], [0], [1], [0, 0, 1, 1], [], []>} : vector<16x8xf32>, vector<8x32xf32>, vector<16x32xf32> -> vector<16x32xf32>
    %179 = arith.addf %139, %178 : vector<16x32xf32>
    %c0_49 = arith.constant 0 : index
    %c0_50 = arith.constant 0 : index
    %180 = vector.load %arg7[%c0_49, %c0_50] : memref<1x32xf32, #tpu.memory_space<vmem>>, vector<1x32xf32>
    %181 = vector.broadcast %180 : vector<1x32xf32> to vector<16x32xf32>
    %182 = arith.addf %179, %181 : vector<16x32xf32>
    %183 = vector.shape_cast %182 : vector<16x32xf32> to vector<2x8x32xf32>
    %184 = vector.extract_strided_slice %183 {offsets = [0, 0, 0], sizes = [2, 1, 32], strides = [1, 1, 1]} : vector<2x8x32xf32> to vector<2x1x32xf32>
    %185 = vector.shape_cast %184 : vector<2x1x32xf32> to vector<2x32xf32>
    %186 = vector.extract_strided_slice %183 {offsets = [0, 1, 0], sizes = [2, 1, 32], strides = [1, 1, 1]} : vector<2x8x32xf32> to vector<2x1x32xf32>
    %187 = vector.shape_cast %186 : vector<2x1x32xf32> to vector<2x32xf32>
    %188 = vector.extract_strided_slice %183 {offsets = [0, 2, 0], sizes = [2, 1, 32], strides = [1, 1, 1]} : vector<2x8x32xf32> to vector<2x1x32xf32>
    %189 = vector.shape_cast %188 : vector<2x1x32xf32> to vector<2x32xf32>
    %190 = vector.extract_strided_slice %183 {offsets = [0, 3, 0], sizes = [2, 1, 32], strides = [1, 1, 1]} : vector<2x8x32xf32> to vector<2x1x32xf32>
    %191 = vector.shape_cast %190 : vector<2x1x32xf32> to vector<2x32xf32>
    %192 = vector.extract_strided_slice %183 {offsets = [0, 4, 0], sizes = [2, 1, 32], strides = [1, 1, 1]} : vector<2x8x32xf32> to vector<2x1x32xf32>
    %193 = vector.shape_cast %192 : vector<2x1x32xf32> to vector<2x32xf32>
    %194 = vector.extract_strided_slice %183 {offsets = [0, 5, 0], sizes = [2, 1, 32], strides = [1, 1, 1]} : vector<2x8x32xf32> to vector<2x1x32xf32>
    %195 = vector.shape_cast %194 : vector<2x1x32xf32> to vector<2x32xf32>
    %196 = vector.extract_strided_slice %183 {offsets = [0, 6, 0], sizes = [2, 1, 32], strides = [1, 1, 1]} : vector<2x8x32xf32> to vector<2x1x32xf32>
    %197 = vector.shape_cast %196 : vector<2x1x32xf32> to vector<2x32xf32>
    %198 = vector.extract_strided_slice %183 {offsets = [0, 7, 0], sizes = [2, 1, 32], strides = [1, 1, 1]} : vector<2x8x32xf32> to vector<2x1x32xf32>
    %199 = vector.shape_cast %198 : vector<2x1x32xf32> to vector<2x32xf32>
    %200 = tpu.concatenate %185, %187, %189, %191, %193, %195, %197, %199 in 1 : vector<2x32xf32>, vector<2x32xf32>, vector<2x32xf32>, vector<2x32xf32>, vector<2x32xf32>, vector<2x32xf32>, vector<2x32xf32>, vector<2x32xf32> -> vector<2x256xf32>
    %c0_51 = arith.constant 0 : index
    %c0_52 = arith.constant 0 : index
    %201 = vector.load %arg9[%c0_51, %c0_52] : memref<2x256xf32, #tpu.memory_space<vmem>>, vector<2x256xf32>
    tpu.vector_store %arg9[%c0_51, %c0_52], %200 {strides = array<i32>} : memref<2x256xf32, #tpu.memory_space<vmem>>, vector<2x256xf32>,
    return
  }
  func.func @transform_0(%arg0: i32) -> (i32, i32, i32) {
    %c0_i32 = arith.constant 0 : i32
    %c0_i32_0 = arith.constant 0 : i32
    %c0_i32_1 = arith.constant 0 : i32
    return %arg0, %c0_i32, %c0_i32_0 : i32, i32, i32
  }
  func.func @transform_1(%arg0: i32) -> (i32, i32, i32) {
    %c0_i32 = arith.constant 0 : i32
    %c0_i32_0 = arith.constant 0 : i32
    %c0_i32_1 = arith.constant 0 : i32
    return %arg0, %c0_i32, %c0_i32_0 : i32, i32, i32
  }
  func.func @transform_2(%arg0: i32) -> (i32, i32, i32) {
    %c0_i32 = arith.constant 0 : i32
    %c0_i32_0 = arith.constant 0 : i32
    %c0_i32_1 = arith.constant 0 : i32
    return %arg0, %c0_i32, %c0_i32_0 : i32, i32, i32
  }
  func.func @transform_3(%arg0: i32) -> (i32, i32) {
    %c0_i32 = arith.constant 0 : i32
    %c0_i32_0 = arith.constant 0 : i32
    %c0_i32_1 = arith.constant 0 : i32
    return %c0_i32, %c0_i32_0 : i32, i32
  }
  func.func @transform_4(%arg0: i32) -> (i32, i32) {
    %c0_i32 = arith.constant 0 : i32
    %c0_i32_0 = arith.constant 0 : i32
    %c0_i32_1 = arith.constant 0 : i32
    return %c0_i32, %c0_i32_0 : i32, i32
  }
  func.func @transform_5(%arg0: i32) -> (i32, i32) {
    %c0_i32 = arith.constant 0 : i32
    %c0_i32_0 = arith.constant 0 : i32
    %c0_i32_1 = arith.constant 0 : i32
    return %c0_i32, %c0_i32_0 : i32, i32
  }
  func.func @transform_6(%arg0: i32) -> (i32, i32) {
    %c0_i32 = arith.constant 0 : i32
    %c0_i32_0 = arith.constant 0 : i32
    %c0_i32_1 = arith.constant 0 : i32
    return %c0_i32, %c0_i32_0 : i32, i32
  }
  func.func @transform_7(%arg0: i32) -> (i32, i32) {
    %c0_i32 = arith.constant 0 : i32
    %c0_i32_0 = arith.constant 0 : i32
    %c0_i32_1 = arith.constant 0 : i32
    return %c0_i32, %c0_i32_0 : i32, i32
  }
  func.func @transform_8(%arg0: i32) -> (i32, i32) {
    %c0_i32 = arith.constant 0 : i32
    %c0_i32_0 = arith.constant 0 : i32
    return %arg0, %c0_i32 : i32, i32
  }
  func.func @transform_9(%arg0: i32) -> (i32, i32, i32) {
    %c0_i32 = arith.constant 0 : i32
    %c0_i32_0 = arith.constant 0 : i32
    %c0_i32_1 = arith.constant 0 : i32
    return %arg0, %c0_i32, %c0_i32_0 : i32, i32, i32
  }
}

</mosaic_0001>

<llo_original>
// kernel: tpu_custom_call.1
$region0: #{tpu_custom_call.1}
  #allocation0 [shape = 'u32[]', space=smem, size = 0x4, offset = 0x4, fixed_abs, tag = 'smem constant byte address 0x4 - core index']
  #allocation1 [shape = 'u32[144,128]{1,0:T(1,128)}', space=vmem, size = 0x12000, scoped, tag = 'internal scratch']
  %s0 = inlined_call_operand.hbm [shape: f32[2,8,32], index: 0, kind: input, shape index: {}]
  %s1 = inlined_call_operand.hbm [shape: f32[2,16,32], index: 1, kind: input, shape index: {}]
  %s2 = inlined_call_operand.hbm [shape: f32[2,16,32], index: 2, kind: input, shape index: {}]
  %s3 = inlined_call_operand.hbm [shape: f32[32,32], index: 3, kind: input, shape index: {}]
  %s4 = inlined_call_operand.hbm [shape: f32[32,32], index: 4, kind: input, shape index: {}]
  %s5 = inlined_call_operand.hbm [shape: f32[32,32], index: 5, kind: input, shape index: {}]
  %s6 = inlined_call_operand.vmem [shape: f32[1,32], index: 6, kind: input, shape index: {}]
  %s7 = inlined_call_operand.vmem [shape: f32[8,16], index: 7, kind: input, shape index: {}]
  %s8 = inlined_call_operand.hbm [shape: f32[2,256], index: 8, kind: output, shape index: {0}]
  %s9 = inlined_call_operand.hbm [shape: f32[2,4,128], index: 9, kind: output, shape index: {1}]
  %10 = xla_tuple %s8, %s9
  %s11 = sld [smem:[#allocation0]]
  $region74: #{tpu_custom_call.1} parent=0
    _
  %s13 = ssub.s32 1, %s11
  %s14 = scalar_select 0, %s13, %s11
  $region1: #{tpu_custom_call.1} parent=0
    #allocation2 [shape = 'u8[8192]{0}', space=vmem, size = 0x2000, scoped, tag = 'input window, operand 0, single buffered']
    #allocation3 [shape = 's32[1]{0}', space=sflag, size = 0x4, scoped, tag = 'scoped memory for tpu_custom_call.1']
    #allocation4 [shape = 's32[1]{0}', space=sflag, size = 0x4, scoped, tag = 'scoped memory for tpu_custom_call.1']
    #allocation5 [shape = 'u8[16384]{0}', space=vmem, size = 0x4000, scoped, tag = 'input window, operand 1, single buffered']
    #allocation6 [shape = 's32[1]{0}', space=sflag, size = 0x4, scoped, tag = 'scoped memory for tpu_custom_call.1']
    #allocation7 [shape = 'u8[16384]{0}', space=vmem, size = 0x4000, scoped, tag = 'input window, operand 2, single buffered']
    #allocation8 [shape = 'u8[16384]{0}', space=vmem, size = 0x4000, scoped, tag = 'input window, operand 3, single buffered']
    #allocation9 [shape = 's32[1]{0}', space=sflag, size = 0x4, scoped, tag = 'scoped memory for tpu_custom_call.1']
    #allocation10 [shape = 'u8[16384]{0}', space=vmem, size = 0x4000, scoped, tag = 'input window, operand 4, single buffered']
    #allocation11 [shape = 'u8[16384]{0}', space=vmem, size = 0x4000, scoped, tag = 'input window, operand 5, single buffered']
    #allocation12 [shape = 's32[1]{0}', space=sflag, size = 0x4, scoped, tag = 'scoped memory for tpu_custom_call.1']
    #allocation13 [shape = 'u8[2048]{0}', space=vmem, size = 0x800, scoped, tag = 'output window, operand 0, single buffered']
    #allocation14 [shape = 'u8[4096]{0}', space=vmem, size = 0x1000, scoped, tag = 'output window, operand 1, single buffered']
    #allocation15 [shape = 's32[1]{0}', space=sflag, size = 0x4, scoped, tag = 'scoped memory for tpu_custom_call.1']
    %15 = vsyncpa [#allocation3], 0
    %16 = vsyncpa [#allocation6], 0
    %17 = vsyncpa [#allocation9], 0
    %18 = vsyncpa [#allocation12], 0
    %19 = vsyncpa [#allocation4], 0
    %20 = vsyncpa [#allocation15], 0
    // Predicated region
    $region2: #{tpu_custom_call.1} parent=1 // pred_check
      _
    $region3: #{tpu_custom_call.1} parent=1 // pred_check_branch
      %22 = sbr.rel (0) target = $region5
    $region4: #{tpu_custom_call.1} parent=1 // pred_region
      %s24 = ssub.s32 256, 256
      %25 = vsyncadd [#allocation3], %s24
      %s26 = sshll.u32 [#allocation2], 4
      %s27 = int_to_ptr.vmem [resolvable:$true] %s26
      %32 = dma.hbm_to_vmem [thread:$0]  %s0, 256, %s27, [#allocation3], 128, 128, 8
    $region5: #{tpu_custom_call.1} parent=1 // pred_fallthru
      _
    // Predicated region
    $region6: #{tpu_custom_call.1} parent=1 // pred_check
      _
    $region7: #{tpu_custom_call.1} parent=1 // pred_check_branch
      %34 = sbr.rel (0) target = $region9
    $region8: #{tpu_custom_call.1} parent=1 // pred_region
      %s36 = ssub.s32 512, 512
      %37 = vsyncadd [#allocation6], %s36
      %s38 = sshll.u32 [#allocation5], 4
      %s39 = int_to_ptr.vmem [resolvable:$true] %s38
      %44 = dma.hbm_to_vmem [thread:$0]  %s1, 512, %s39, [#allocation6], 128, 128, 8
    $region9: #{tpu_custom_call.1} parent=1 // pred_fallthru
      _
    // Predicated region
    $region10: #{tpu_custom_call.1} parent=1 // pred_check
      _
    $region11: #{tpu_custom_call.1} parent=1 // pred_check_branch
      %46 = sbr.rel (0) target = $region13
    $region12: #{tpu_custom_call.1} parent=1 // pred_region
      %s48 = ssub.s32 512, 512
      %49 = vsyncadd [#allocation6], %s48
      %s50 = sshll.u32 [#allocation7], 4
      %s51 = int_to_ptr.vmem [resolvable:$true] %s50
      %56 = dma.hbm_to_vmem [thread:$0]  %s2, 512, %s51, [#allocation6], 128, 128, 8
    $region13: #{tpu_custom_call.1} parent=1 // pred_fallthru
      _
    // Predicated region
    $region14: #{tpu_custom_call.1} parent=1 // pred_check
      _
    $region15: #{tpu_custom_call.1} parent=1 // pred_check_branch
      %58 = sbr.rel (0) target = $region17
    $region16: #{tpu_custom_call.1} parent=1 // pred_region
      %s60 = ssub.s32 512, 512
      %61 = vsyncadd [#allocation9], %s60
      %s62 = sshll.u32 [#allocation8], 4
      %s63 = int_to_ptr.vmem [resolvable:$true] %s62
      %68 = dma.hbm_to_vmem [thread:$0]  %s3, 512, %s63, [#allocation9], 128, 128, 8
    $region17: #{tpu_custom_call.1} parent=1 // pred_fallthru
      _
    // Predicated region
    $region18: #{tpu_custom_call.1} parent=1 // pred_check
      _
    $region19: #{tpu_custom_call.1} parent=1 // pred_check_branch
      %70 = sbr.rel (0) target = $region21
    $region20: #{tpu_custom_call.1} parent=1 // pred_region
      %s72 = ssub.s32 512, 512
      %73 = vsyncadd [#allocation9], %s72
      %s74 = sshll.u32 [#allocation10], 4
      %s75 = int_to_ptr.vmem [resolvable:$true] %s74
      %80 = dma.hbm_to_vmem [thread:$0]  %s4, 512, %s75, [#allocation9], 128, 128, 8
    $region21: #{tpu_custom_call.1} parent=1 // pred_fallthru
      _
    // Predicated region
    $region22: #{tpu_custom_call.1} parent=1 // pred_check
      _
    $region23: #{tpu_custom_call.1} parent=1 // pred_check_branch
      %82 = sbr.rel (0) target = $region25
    $region24: #{tpu_custom_call.1} parent=1 // pred_region
      %s84 = ssub.s32 512, 512
      %85 = vsyncadd [#allocation12], %s84
      %s86 = sshll.u32 [#allocation11], 4
      %s87 = int_to_ptr.vmem [resolvable:$true] %s86
      %92 = dma.hbm_to_vmem [thread:$0]  %s5, 512, %s87, [#allocation12], 128, 128, 8
    $region25: #{tpu_custom_call.1} parent=1 // pred_fallthru
      _
    // Predicated region
    $region26: #{tpu_custom_call.1} parent=1 // pred_check
      _
    $region27: #{tpu_custom_call.1} parent=1 // pred_check_branch
      %94 = sbr.rel (0) target = $region29
    $region28: #{tpu_custom_call.1} parent=1 // pred_region
      _
    $region29: #{tpu_custom_call.1} parent=1 // pred_fallthru
      _
    // Predicated region
    $region30: #{tpu_custom_call.1} parent=1 // pred_check
      _
    $region31: #{tpu_custom_call.1} parent=1 // pred_check_branch
      %96 = sbr.rel (0) target = $region33
    $region32: #{tpu_custom_call.1} parent=1 // pred_region
      _
    $region33: #{tpu_custom_call.1} parent=1 // pred_fallthru
      _
    // Predicated region
    $region34: #{tpu_custom_call.1} parent=1 // pred_check
      _
    $region35: #{tpu_custom_call.1} parent=1 // pred_check_branch
      %98 = sbr.rel (0) target = $region37
    $region36: #{tpu_custom_call.1} parent=1 // pred_region
      %99 = dma.done [#allocation3], 256
    $region37: #{tpu_custom_call.1} parent=1 // pred_fallthru
      _
    // Predicated region
    $region38: #{tpu_custom_call.1} parent=1 // pred_check
      _
    $region39: #{tpu_custom_call.1} parent=1 // pred_check_branch
      %101 = sbr.rel (0) target = $region41
    $region40: #{tpu_custom_call.1} parent=1 // pred_region
      %102 = dma.done [#allocation6], 512
    $region41: #{tpu_custom_call.1} parent=1 // pred_fallthru
      _
    // Predicated region
    $region42: #{tpu_custom_call.1} parent=1 // pred_check
      _
    $region43: #{tpu_custom_call.1} parent=1 // pred_check_branch
      %104 = sbr.rel (0) target = $region45
    $region44: #{tpu_custom_call.1} parent=1 // pred_region
      %105 = dma.done [#allocation6], 512
    $region45: #{tpu_custom_call.1} parent=1 // pred_fallthru
      _
    // Predicated region
    $region46: #{tpu_custom_call.1} parent=1 // pred_check
      _
    $region47: #{tpu_custom_call.1} parent=1 // pred_check_branch
      %107 = sbr.rel (0) target = $region49
    $region48: #{tpu_custom_call.1} parent=1 // pred_region
      %108 = dma.done [#allocation9], 512
    $region49: #{tpu_custom_call.1} parent=1 // pred_fallthru
      _
    // Predicated region
    $region50: #{tpu_custom_call.1} parent=1 // pred_check
      _
    $region51: #{tpu_custom_call.1} parent=1 // pred_check_branch
      %110 = sbr.rel (0) target = $region53
    $region52: #{tpu_custom_call.1} parent=1 // pred_region
      %111 = dma.done [#allocation9], 512
    $region53: #{tpu_custom_call.1} parent=1 // pred_fallthru
      _
    // Predicated region
    $region54: #{tpu_custom_call.1} parent=1 // pred_check
      _
    $region55: #{tpu_custom_call.1} parent=1 // pred_check_branch
      %113 = sbr.rel (0) target = $region57
    $region56: #{tpu_custom_call.1} parent=1 // pred_region
      %114 = dma.done [#allocation12], 512
    $region57: #{tpu_custom_call.1} parent=1 // pred_fallthru
      _
    %v115 = vld [vmem:[#allocation2] sm:$0xff]
    %v116 = vld [vmem:[#allocation2 + $0x8] sm:$0xff]
    %v117 = vld [vmem:[#allocation5] sm:$0xff]
    %v118 = vld [vmem:[#allocation5 + $0x8] sm:$0xff]
    %v119 = vld [vmem:[#allocation5 + $0x10] sm:$0xff]
    %v120 = vld [vmem:[#allocation5 + $0x18] sm:$0xff]
    %v121 = vld [vmem:[#allocation7] sm:$0xff]
    %v122 = vld [vmem:[#allocation7 + $0x8] sm:$0xff]
    %v123 = vld [vmem:[#allocation7 + $0x10] sm:$0xff]
    %v124 = vld [vmem:[#allocation7 + $0x18] sm:$0xff]
    %v125 = vld [vmem:[#allocation8] sm:$0xff]
    %v126 = vld [vmem:[#allocation8 + $0x8] sm:$0xff]
    %v127 = vld [vmem:[#allocation8 + $0x10] sm:$0xff]
    %v128 = vld [vmem:[#allocation8 + $0x18] sm:$0xff]
    %v129 = vld [vmem:[#allocation10] sm:$0xff]
    %v130 = vld [vmem:[#allocation10 + $0x8] sm:$0xff]
    %v131 = vld [vmem:[#allocation10 + $0x10] sm:$0xff]
    %v132 = vld [vmem:[#allocation10 + $0x18] sm:$0xff]
    %v133 = vld [vmem:[#allocation11] sm:$0xff]
    %v134 = vld [vmem:[#allocation11 + $0x8] sm:$0xff]
    %v135 = vld [vmem:[#allocation11 + $0x10] sm:$0xff]
    %v136 = vld [vmem:[#allocation11 + $0x18] sm:$0xff]
    %vm137 = vcmask 261120
    %v139 = vsel %vm137, %v115, 0
    %v142 = vsel %vm137, %v116, 0
    %144 = vmatprep.subr.mxu0 0.0
    %145 = vmatpush1.msra.mxu0 %v125
    %146 = vmatprep.subr.mxu0 0.0
    %147 = vmatpush1.msra.mxu0 %v126
    %148 = vmatprep.subr.mxu0 0.0
    %149 = vmatpush1.msra.mxu0 %v127
    %150 = vmatprep.subr.mxu0 0.0
    %151 = vmatpush1.msra.mxu0 %v128
    %152 = vmatprep.subr.mxu0 0.0
    %153 = vmatpush1.msra.mxu0 0.0
    %154 = vmatprep.subr.mxu0 0.0
    %155 = vmatpush1.msra.mxu0 0.0
    %156 = vmatprep.subr.mxu0 0.0
    %157 = vmatpush1.msra.mxu0 0.0
    %158 = vmatprep.subr.mxu0 0.0
    %159 = vmatpush1.msra.mxu0 0.0
    %160 = vmatprep.subr.mxu0 0.0
    %161 = vmatpush1.msra.mxu0 0.0
    %162 = vmatprep.subr.mxu0 0.0
    %163 = vmatpush1.msra.mxu0 0.0
    %164 = vmatprep.subr.mxu0 0.0
    %165 = vmatpush1.msra.mxu0 0.0
    %166 = vmatprep.subr.mxu0 0.0
    %167 = vmatpush1.msra.mxu0 0.0
    %168 = vmatprep.subr.mxu0 0.0
    %169 = vmatpush1.msra.mxu0 0.0
    %170 = vmatprep.subr.mxu0 0.0
    %171 = vmatpush1.msra.mxu0 0.0
    %172 = vmatprep.subr.mxu0 0.0
    %173 = vmatpush1.msra.mxu0 0.0
    %174 = vmatprep.subr.mxu0 0.0
    %175 = vmatpush1.msra.mxu0 0.0
    %176 = vmatprep.subr.mxu0 0.0
    %177 = vmatpush1.msra.mxu0 0.0
    %178 = vmatprep.subr.mxu0 0.0
    %179 = vmatpush1.msra.mxu0 0.0
    %180 = vmatprep.subr.mxu0 0.0
    %181 = vmatpush1.msra.mxu0 0.0
    %182 = vmatprep.subr.mxu0 0.0
    %183 = vmatpush1.msra.mxu0 0.0
    %184 = vmatprep.subr.mxu0 0.0
    %185 = vmatpush1.msra.mxu0 0.0
    %186 = vmatprep.subr.mxu0 0.0
    %187 = vmatpush1.msra.mxu0 0.0
    %188 = vmatprep.subr.mxu0 0.0
    %189 = vmatpush1.msra.mxu0 0.0
    %190 = vmatprep.subr.mxu0 0.0
    %191 = vmatpush1.msra.mxu0 0.0
    %192 = vmatprep.subr.mxu0 0.0
    %193 = vmatpush1.msra.mxu0 0.0
    %194 = vmatprep.subr.mxu0 0.0
    %195 = vmatpush1.msra.mxu0 0.0
    %196 = vmatprep.subr.mxu0 0.0
    %197 = vmatpush1.msra.mxu0 0.0
    %198 = vmatprep.subr.mxu0 0.0
    %199 = vmatpush1.msra.mxu0 0.0
    %200 = vmatprep.subr.mxu0 0.0
    %201 = vmatpush1.msra.mxu0 0.0
    %202 = vmatprep.subr.mxu0 0.0
    %203 = vmatpush1.msra.mxu0 0.0
    %204 = vmatprep.subr.mxu0 0.0
    %205 = vmatpush1.msra.mxu0 0.0
    %206 = vmatprep.subr.mxu0 0.0
    %207 = vmatpush1.msra.mxu0 0.0
    %208 = vmatprep.mubr.f32.mxu0 0.0
    %209 = vmatmul.mubr.f32.gmra.mrb[0].mxu0 %v139
    %v210 = vpop.f32.mrb[0].mxu0
    %v211 = vadd.f32 0.0, %v210
    %v212 = vpop.f32.mrb[0].mxu0
    %213 = vmatprep.mubr.f32.mxu0 0.0
    %214 = vmatmul.mubr.f32.gmra.mrb[0].mxu0 %v142
    %v215 = vpop.f32.mrb[0].mxu0
    %v216 = vadd.f32 0.0, %v215
    %v217 = vpop.f32.mrb[0].mxu0
    %218 = vdwg.mxu0
    %v219 = vmul.f32 %v211, 0.35355338
    %v220 = vmul.f32 %v216, 0.35355338
    %v222 = vsel %vm137, %v117, 0
    %v225 = vsel %vm137, %v118, 0
    %v228 = vsel %vm137, %v119, 0
    %v231 = vsel %vm137, %v120, 0
    %233 = vmatprep.subr.mxu0 0.0
    %234 = vmatpush1.msra.mxu0 %v125
    %235 = vmatprep.subr.mxu0 0.0
    %236 = vmatpush1.msra.mxu0 %v126
    %237 = vmatprep.subr.mxu0 0.0
    %238 = vmatpush1.msra.mxu0 %v127
    %239 = vmatprep.subr.mxu0 0.0
    %240 = vmatpush1.msra.mxu0 %v128
    %241 = vmatprep.subr.mxu0 0.0
    %242 = vmatpush1.msra.mxu0 0.0
    %243 = vmatprep.subr.mxu0 0.0
    %244 = vmatpush1.msra.mxu0 0.0
    %245 = vmatprep.subr.mxu0 0.0
    %246 = vmatpush1.msra.mxu0 0.0
    %247 = vmatprep.subr.mxu0 0.0
    %248 = vmatpush1.msra.mxu0 0.0
    %249 = vmatprep.subr.mxu0 0.0
    %250 = vmatpush1.msra.mxu0 0.0
    %251 = vmatprep.subr.mxu0 0.0
    %252 = vmatpush1.msra.mxu0 0.0
    %253 = vmatprep.subr.mxu0 0.0
    %254 = vmatpush1.msra.mxu0 0.0
    %255 = vmatprep.subr.mxu0 0.0
    %256 = vmatpush1.msra.mxu0 0.0
    %257 = vmatprep.subr.mxu0 0.0
    %258 = vmatpush1.msra.mxu0 0.0
    %259 = vmatprep.subr.mxu0 0.0
    %260 = vmatpush1.msra.mxu0 0.0
    %261 = vmatprep.subr.mxu0 0.0
    %262 = vmatpush1.msra.mxu0 0.0
    %263 = vmatprep.subr.mxu0 0.0
    %264 = vmatpush1.msra.mxu0 0.0
    %265 = vmatprep.subr.mxu0 0.0
    %266 = vmatpush1.msra.mxu0 0.0
    %267 = vmatprep.subr.mxu0 0.0
    %268 = vmatpush1.msra.mxu0 0.0
    %269 = vmatprep.subr.mxu0 0.0
    %270 = vmatpush1.msra.mxu0 0.0
    %271 = vmatprep.subr.mxu0 0.0
    %272 = vmatpush1.msra.mxu0 0.0
    %273 = vmatprep.subr.mxu0 0.0
    %274 = vmatpush1.msra.mxu0 0.0
    %275 = vmatprep.subr.mxu0 0.0
    %276 = vmatpush1.msra.mxu0 0.0
    %277 = vmatprep.subr.mxu0 0.0
    %278 = vmatpush1.msra.mxu0 0.0
    %279 = vmatprep.subr.mxu0 0.0
    %280 = vmatpush1.msra.mxu0 0.0
    %281 = vmatprep.subr.mxu0 0.0
    %282 = vmatpush1.msra.mxu0 0.0
    %283 = vmatprep.subr.mxu0 0.0
    %284 = vmatpush1.msra.mxu0 0.0
    %285 = vmatprep.subr.mxu0 0.0
    %286 = vmatpush1.msra.mxu0 0.0
    %287 = vmatprep.subr.mxu0 0.0
    %288 = vmatpush1.msra.mxu0 0.0
    %289 = vmatprep.subr.mxu0 0.0
    %290 = vmatpush1.msra.mxu0 0.0
    %291 = vmatprep.subr.mxu0 0.0
    %292 = vmatpush1.msra.mxu0 0.0
    %293 = vmatprep.subr.mxu0 0.0
    %294 = vmatpush1.msra.mxu0 0.0
    %295 = vmatprep.subr.mxu0 0.0
    %296 = vmatpush1.msra.mxu0 0.0
    %297 = vmatprep.mubr.f32.mxu0 0.0
    %298 = vmatmul.mubr.f32.gmra.mrb[0].mxu0 %v222
    %v299 = vpop.f32.mrb[0].mxu0
    %v300 = vadd.f32 0.0, %v299
    %v301 = vpop.f32.mrb[0].mxu0
    %302 = vmatprep.mubr.f32.mxu0 0.0
    %303 = vmatmul.mubr.f32.gmra.mrb[0].mxu0 %v225
    %v304 = vpop.f32.mrb[0].mxu0
    %v305 = vadd.f32 0.0, %v304
    %v306 = vpop.f32.mrb[0].mxu0
    %307 = vmatprep.mubr.f32.mxu0 0.0
    %308 = vmatmul.mubr.f32.gmra.mrb[0].mxu0 %v228
    %v309 = vpop.f32.mrb[0].mxu0
    %v310 = vadd.f32 0.0, %v309
    %v311 = vpop.f32.mrb[0].mxu0
    %312 = vmatprep.mubr.f32.mxu0 0.0
    %313 = vmatmul.mubr.f32.gmra.mrb[0].mxu0 %v231
    %v314 = vpop.f32.mrb[0].mxu0
    %v315 = vadd.f32 0.0, %v314
    %v316 = vpop.f32.mrb[0].mxu0
    %317 = vdwg.mxu0
    %v319 = vsel %vm137, %v121, 0
    %v322 = vsel %vm137, %v122, 0
    %v325 = vsel %vm137, %v123, 0
    %v328 = vsel %vm137, %v124, 0
    %330 = vmatprep.subr.mxu0 0.0
    %331 = vmatpush1.msra.mxu0 %v129
    %332 = vmatprep.subr.mxu0 0.0
    %333 = vmatpush1.msra.mxu0 %v130
    %334 = vmatprep.subr.mxu0 0.0
    %335 = vmatpush1.msra.mxu0 %v131
    %336 = vmatprep.subr.mxu0 0.0
    %337 = vmatpush1.msra.mxu0 %v132
    %338 = vmatprep.subr.mxu0 0.0
    %339 = vmatpush1.msra.mxu0 0.0
    %340 = vmatprep.subr.mxu0 0.0
    %341 = vmatpush1.msra.mxu0 0.0
    %342 = vmatprep.subr.mxu0 0.0
    %343 = vmatpush1.msra.mxu0 0.0
    %344 = vmatprep.subr.mxu0 0.0
    %345 = vmatpush1.msra.mxu0 0.0
    %346 = vmatprep.subr.mxu0 0.0
    %347 = vmatpush1.msra.mxu0 0.0
    %348 = vmatprep.subr.mxu0 0.0
    %349 = vmatpush1.msra.mxu0 0.0
    %350 = vmatprep.subr.mxu0 0.0
    %351 = vmatpush1.msra.mxu0 0.0
    %352 = vmatprep.subr.mxu0 0.0
    %353 = vmatpush1.msra.mxu0 0.0
    %354 = vmatprep.subr.mxu0 0.0
    %355 = vmatpush1.msra.mxu0 0.0
    %356 = vmatprep.subr.mxu0 0.0
    %357 = vmatpush1.msra.mxu0 0.0
    %358 = vmatprep.subr.mxu0 0.0
    %359 = vmatpush1.msra.mxu0 0.0
    %360 = vmatprep.subr.mxu0 0.0
    %361 = vmatpush1.msra.mxu0 0.0
    %362 = vmatprep.subr.mxu0 0.0
    %363 = vmatpush1.msra.mxu0 0.0
    %364 = vmatprep.subr.mxu0 0.0
    %365 = vmatpush1.msra.mxu0 0.0
    %366 = vmatprep.subr.mxu0 0.0
    %367 = vmatpush1.msra.mxu0 0.0
    %368 = vmatprep.subr.mxu0 0.0
    %369 = vmatpush1.msra.mxu0 0.0
    %370 = vmatprep.subr.mxu0 0.0
    %371 = vmatpush1.msra.mxu0 0.0
    %372 = vmatprep.subr.mxu0 0.0
    %373 = vmatpush1.msra.mxu0 0.0
    %374 = vmatprep.subr.mxu0 0.0
    %375 = vmatpush1.msra.mxu0 0.0
    %376 = vmatprep.subr.mxu0 0.0
    %377 = vmatpush1.msra.mxu0 0.0
    %378 = vmatprep.subr.mxu0 0.0
    %379 = vmatpush1.msra.mxu0 0.0
    %380 = vmatprep.subr.mxu0 0.0
    %381 = vmatpush1.msra.mxu0 0.0
    %382 = vmatprep.subr.mxu0 0.0
    %383 = vmatpush1.msra.mxu0 0.0
    %384 = vmatprep.subr.mxu0 0.0
    %385 = vmatpush1.msra.mxu0 0.0
    %386 = vmatprep.subr.mxu0 0.0
    %387 = vmatpush1.msra.mxu0 0.0
    %388 = vmatprep.subr.mxu0 0.0
    %389 = vmatpush1.msra.mxu0 0.0
    %390 = vmatprep.subr.mxu0 0.0
    %391 = vmatpush1.msra.mxu0 0.0
    %392 = vmatprep.subr.mxu0 0.0
    %393 = vmatpush1.msra.mxu0 0.0
    %394 = vmatprep.mubr.f32.mxu0 0.0
    %395 = vmatmul.mubr.f32.gmra.mrb[0].mxu0 %v319
    %v396 = vpop.f32.mrb[0].mxu0
    %v397 = vadd.f32 0.0, %v396
    %v398 = vpop.f32.mrb[0].mxu0
    %399 = vmatprep.mubr.f32.mxu0 0.0
    %400 = vmatmul.mubr.f32.gmra.mrb[0].mxu0 %v322
    %v401 = vpop.f32.mrb[0].mxu0
    %v402 = vadd.f32 0.0, %v401
    %v403 = vpop.f32.mrb[0].mxu0
    %404 = vmatprep.mubr.f32.mxu0 0.0
    %405 = vmatmul.mubr.f32.gmra.mrb[0].mxu0 %v325
    %v406 = vpop.f32.mrb[0].mxu0
    %v407 = vadd.f32 0.0, %v406
    %v408 = vpop.f32.mrb[0].mxu0
    %409 = vmatprep.mubr.f32.mxu0 0.0
    %410 = vmatmul.mubr.f32.gmra.mrb[0].mxu0 %v328
    %v411 = vpop.f32.mrb[0].mxu0
    %v412 = vadd.f32 0.0, %v411
    %v413 = vpop.f32.mrb[0].mxu0
    %414 = vdwg.mxu0
    %v415 = vld [vmem:[%s7] sm:$0xff]
    %vm416 = vcmask 64512
    %v418 = vsel %vm416, %v219, 0
    %v421 = vsel %vm416, %v300, 0
    %v424 = vsel %vm416, %v305, 0
    %426 = vmatprep.subr.mxu0 0.0
    %427 = vmatpush1.xpose.msra.mxu0 %v421
    %428 = vmatprep.subr.mxu0 0.0
    %429 = vmatpush1.xpose.msra.mxu0 %v424
    %430 = vmatprep.subr.mxu0 0.0
    %431 = vmatpush1.xpose.msra.mxu0 0.0
    %432 = vmatprep.subr.mxu0 0.0
    %433 = vmatpush1.xpose.msra.mxu0 0.0
    %434 = vmatprep.subr.mxu0 0.0
    %435 = vmatpush1.xpose.msra.mxu0 0.0
    %436 = vmatprep.subr.mxu0 0.0
    %437 = vmatpush1.xpose.msra.mxu0 0.0
    %438 = vmatprep.subr.mxu0 0.0
    %439 = vmatpush1.xpose.msra.mxu0 0.0
    %440 = vmatprep.subr.mxu0 0.0
    %441 = vmatpush1.xpose.msra.mxu0 0.0
    %442 = vmatprep.subr.mxu0 0.0
    %443 = vmatpush1.xpose.msra.mxu0 0.0
    %444 = vmatprep.subr.mxu0 0.0
    %445 = vmatpush1.xpose.msra.mxu0 0.0
    %446 = vmatprep.subr.mxu0 0.0
    %447 = vmatpush1.xpose.msra.mxu0 0.0
    %448 = vmatprep.subr.mxu0 0.0
    %449 = vmatpush1.xpose.msra.mxu0 0.0
    %450 = vmatprep.subr.mxu0 0.0
    %451 = vmatpush1.xpose.msra.mxu0 0.0
    %452 = vmatprep.subr.mxu0 0.0
    %453 = vmatpush1.xpose.msra.mxu0 0.0
    %454 = vmatprep.subr.mxu0 0.0
    %455 = vmatpush1.xpose.msra.mxu0 0.0
    %456 = vmatprep.subr.mxu0 0.0
    %457 = vmatpush1.xpose.msra.mxu0 0.0
    %458 = vmatprep.subr.mxu0 0.0
    %459 = vmatpush1.xpose.msra.mxu0 0.0
    %460 = vmatprep.subr.mxu0 0.0
    %461 = vmatpush1.xpose.msra.mxu0 0.0
    %462 = vmatprep.subr.mxu0 0.0
    %463 = vmatpush1.xpose.msra.mxu0 0.0
    %464 = vmatprep.subr.mxu0 0.0
    %465 = vmatpush1.xpose.msra.mxu0 0.0
    %466 = vmatprep.subr.mxu0 0.0
    %467 = vmatpush1.xpose.msra.mxu0 0.0
    %468 = vmatprep.subr.mxu0 0.0
    %469 = vmatpush1.xpose.msra.mxu0 0.0
    %470 = vmatprep.subr.mxu0 0.0
    %471 = vmatpush1.xpose.msra.mxu0 0.0
    %472 = vmatprep.subr.mxu0 0.0
    %473 = vmatpush1.xpose.msra.mxu0 0.0
    %474 = vmatprep.subr.mxu0 0.0
    %475 = vmatpush1.xpose.msra.mxu0 0.0
    %476 = vmatprep.subr.mxu0 0.0
    %477 = vmatpush1.xpose.msra.mxu0 0.0
    %478 = vmatprep.subr.mxu0 0.0
    %479 = vmatpush1.xpose.msra.mxu0 0.0
    %480 = vmatprep.subr.mxu0 0.0
    %481 = vmatpush1.xpose.msra.mxu0 0.0
    %482 = vmatprep.subr.mxu0 0.0
    %483 = vmatpush1.xpose.msra.mxu0 0.0
    %484 = vmatprep.subr.mxu0 0.0
    %485 = vmatpush1.xpose.msra.mxu0 0.0
    %486 = vmatprep.subr.mxu0 0.0
    %487 = vmatpush1.xpose.msra.mxu0 0.0
    %488 = vmatprep.subr.mxu0 0.0
    %489 = vmatpush1.xpose.msra.mxu0 0.0
    %490 = vmatprep.mubr.f32.mxu0 0.0
    %491 = vmatmul.mubr.f32.gmra.mrb[0].mxu0 %v418
    %v492 = vpop.f32.mrb[0].mxu0
    %v493 = vadd.f32 %v415, %v492
    %v494 = vpop.f32.mrb[0].mxu0
    %495 = vdwg.mxu0
    %v497 = vsel %vm416, %v220, 0
    %v500 = vsel %vm416, %v310, 0
    %v503 = vsel %vm416, %v315, 0
    %505 = vmatprep.subr.mxu0 0.0
    %506 = vmatpush1.xpose.msra.mxu0 %v500
    %507 = vmatprep.subr.mxu0 0.0
    %508 = vmatpush1.xpose.msra.mxu0 %v503
    %509 = vmatprep.subr.mxu0 0.0
    %510 = vmatpush1.xpose.msra.mxu0 0.0
    %511 = vmatprep.subr.mxu0 0.0
    %512 = vmatpush1.xpose.msra.mxu0 0.0
    %513 = vmatprep.subr.mxu0 0.0
    %514 = vmatpush1.xpose.msra.mxu0 0.0
    %515 = vmatprep.subr.mxu0 0.0
    %516 = vmatpush1.xpose.msra.mxu0 0.0
    %517 = vmatprep.subr.mxu0 0.0
    %518 = vmatpush1.xpose.msra.mxu0 0.0
    %519 = vmatprep.subr.mxu0 0.0
    %520 = vmatpush1.xpose.msra.mxu0 0.0
    %521 = vmatprep.subr.mxu0 0.0
    %522 = vmatpush1.xpose.msra.mxu0 0.0
    %523 = vmatprep.subr.mxu0 0.0
    %524 = vmatpush1.xpose.msra.mxu0 0.0
    %525 = vmatprep.subr.mxu0 0.0
    %526 = vmatpush1.xpose.msra.mxu0 0.0
    %527 = vmatprep.subr.mxu0 0.0
    %528 = vmatpush1.xpose.msra.mxu0 0.0
    %529 = vmatprep.subr.mxu0 0.0
    %530 = vmatpush1.xpose.msra.mxu0 0.0
    %531 = vmatprep.subr.mxu0 0.0
    %532 = vmatpush1.xpose.msra.mxu0 0.0
    %533 = vmatprep.subr.mxu0 0.0
    %534 = vmatpush1.xpose.msra.mxu0 0.0
    %535 = vmatprep.subr.mxu0 0.0
    %536 = vmatpush1.xpose.msra.mxu0 0.0
    %537 = vmatprep.subr.mxu0 0.0
    %538 = vmatpush1.xpose.msra.mxu0 0.0
    %539 = vmatprep.subr.mxu0 0.0
    %540 = vmatpush1.xpose.msra.mxu0 0.0
    %541 = vmatprep.subr.mxu0 0.0
    %542 = vmatpush1.xpose.msra.mxu0 0.0
    %543 = vmatprep.subr.mxu0 0.0
    %544 = vmatpush1.xpose.msra.mxu0 0.0
    %545 = vmatprep.subr.mxu0 0.0
    %546 = vmatpush1.xpose.msra.mxu0 0.0
    %547 = vmatprep.subr.mxu0 0.0
    %548 = vmatpush1.xpose.msra.mxu0 0.0
    %549 = vmatprep.subr.mxu0 0.0
    %550 = vmatpush1.xpose.msra.mxu0 0.0
    %551 = vmatprep.subr.mxu0 0.0
    %552 = vmatpush1.xpose.msra.mxu0 0.0
    %553 = vmatprep.subr.mxu0 0.0
    %554 = vmatpush1.xpose.msra.mxu0 0.0
    %555 = vmatprep.subr.mxu0 0.0
    %556 = vmatpush1.xpose.msra.mxu0 0.0
    %557 = vmatprep.subr.mxu0 0.0
    %558 = vmatpush1.xpose.msra.mxu0 0.0
    %559 = vmatprep.subr.mxu0 0.0
    %560 = vmatpush1.xpose.msra.mxu0 0.0
    %561 = vmatprep.subr.mxu0 0.0
    %562 = vmatpush1.xpose.msra.mxu0 0.0
    %563 = vmatprep.subr.mxu0 0.0
    %564 = vmatpush1.xpose.msra.mxu0 0.0
    %565 = vmatprep.subr.mxu0 0.0
    %566 = vmatpush1.xpose.msra.mxu0 0.0
    %567 = vmatprep.subr.mxu0 0.0
    %568 = vmatpush1.xpose.msra.mxu0 0.0
    %569 = vmatprep.mubr.f32.mxu0 0.0
    %570 = vmatmul.mubr.f32.gmra.mrb[0].mxu0 %v497
    %v571 = vpop.f32.mrb[0].mxu0
    %v572 = vadd.f32 %v415, %v571
    %v573 = vpop.f32.mrb[0].mxu0
    %574 = vdwg.mxu0
    %vm575 = vcmask 130048
    %v576 = vsel %vm575, %v493, -inf
    %577 = vmax.xlane.f32.xlu0 %v576
    %v578 = vpop.xlane.xlu0 %577
    %v579 = vsel %vm575, %v572, -inf
    %580 = vmax.xlane.f32.xlu0 %v579
    %v581 = vpop.xlane.xlu0 %580
    %v582 = vsub.f32 %v493, %v578
    %v583 = vsub.f32 %v572, %v581
    %v584 = vmul.f32 %v582, 1.442695
    %v585 = vpow.pop %v584
    %v586 = vmul.f32 %v583, 1.442695
    %v587 = vpow.pop %v586
    %v588 = vsel %vm575, %v585, 0.0
    %589 = vadd.xlane.f32.xlu0 %v588
    %v590 = vpop.xlane.xlu0 %589
    %v591 = vsel %vm575, %v587, 0.0
    %592 = vadd.xlane.f32.xlu0 %v591
    %v593 = vpop.xlane.xlu0 %592
    %v594 = vrcp.pop %v590
    %v595 = vmul.f32 %v585, %v594
    %v596 = vrcp.pop %v593
    %v597 = vmul.f32 %v587, %v596
    %v600 = vrot.slane %v597, 7
    %vm601 = vcmask 1041409
    %v602 = vsel %vm601, %v600, %v595
    %v604 = vrot.slane %v595, 1
    %v605 = vsel %vm601, %v597, %v604
    %606 = vrot.lane.b32.xlu0 %v605, 16
    %v607 = vpop.permute.xlu0 %606
    %v609 = vrot.slane %v595, 2
    %v610 = vrot.slane %v597, 1
    %v611 = vsel %vm601, %v610, %v609
    %612 = vrot.lane.b32.xlu0 %v611, 32
    %v613 = vpop.permute.xlu0 %612
    %v615 = vrot.slane %v595, 3
    %v616 = vrot.slane %v597, 2
    %v617 = vsel %vm601, %v616, %v615
    %618 = vrot.lane.b32.xlu0 %v617, 48
    %v619 = vpop.permute.xlu0 %618
    %v621 = vrot.slane %v595, 4
    %v622 = vrot.slane %v597, 3
    %v623 = vsel %vm601, %v622, %v621
    %624 = vrot.lane.b32.xlu0 %v623, 64
    %v625 = vpop.permute.xlu0 %624
    %v627 = vrot.slane %v595, 5
    %v628 = vrot.slane %v597, 4
    %v629 = vsel %vm601, %v628, %v627
    %630 = vrot.lane.b32.xlu0 %v629, 80
    %v631 = vpop.permute.xlu0 %630
    %v633 = vrot.slane %v595, 6
    %v634 = vrot.slane %v597, 5
    %v635 = vsel %vm601, %v634, %v633
    %636 = vrot.lane.b32.xlu0 %v635, 96
    %v637 = vpop.permute.xlu0 %636
    %v639 = vrot.slane %v595, 7
    %v640 = vrot.slane %v597, 6
    %v641 = vsel %vm601, %v640, %v639
    %642 = vrot.lane.b32.xlu0 %v641, 112
    %v643 = vpop.permute.xlu0 %642
    %v645 = vsel %vm575, %v602, %v607
    %v646 = vsel %vm137, %v645, %v613
    %vm647 = vcmask 392192
    %v648 = vsel %vm647, %v646, %v619
    %vm649 = vcmask 523264
    %v650 = vsel %vm649, %v648, %v625
    %vm651 = vcmask 654336
    %v652 = vsel %vm651, %v650, %v631
    %vm653 = vcmask 785408
    %v654 = vsel %vm653, %v652, %v637
    %vm655 = vcmask 916480
    %v656 = vsel %vm655, %v654, %v643
    %v659 = vunpack.c.l.s4 1966171168
    %v660 = vunpack.c.0.s8 %v659
    %v661 = vlaneseq
    %v662 = vshrl.u32 %v661, 7
    %v663 = vsub.s32 %v660, %v662
    %v664 = vrot.slane %v656, %v663
    %v665 = vcombine.high %v664, %v664
    %v667 = vunpack.c.l.s4 1966171168
    %v668 = vunpack.c.0.s8 %v667
    %v669 = vlaneseq
    %v670 = vshrl.u32 %v669, 7
    %v671 = vsub.s32 %v668, %v670
    %v672 = vrot.slane %v664, %v671
    %v674 = vunpack.c.l.s4 1966171168
    %v675 = vunpack.c.0.s8 %v674
    %v676 = vlaneseq
    %v677 = vshrl.u32 %v676, 7
    %v678 = vsub.s32 %v675, %v677
    %v679 = vrot.slane %v665, %v678
    %682 = vst [vmem:[#allocation14] sm:$0x1] %v672
    %683 = vst [vmem:[#allocation14 + $0x4] sm:$0x1] %v679
    %v684 = vsel %vm575, %v595, 0
    %686 = vmatprep.subr.mxu0 0.0
    %687 = vmatpush1.msra.mxu0 %v397
    %688 = vmatprep.subr.mxu0 0.0
    %689 = vmatpush1.msra.mxu0 %v402
    %690 = vmatprep.subr.mxu0 0.0
    %691 = vmatpush1.msra.mxu0 0.0
    %692 = vmatprep.subr.mxu0 0.0
    %693 = vmatpush1.msra.mxu0 0.0
    %694 = vmatprep.subr.mxu0 0.0
    %695 = vmatpush1.msra.mxu0 0.0
    %696 = vmatprep.subr.mxu0 0.0
    %697 = vmatpush1.msra.mxu0 0.0
    %698 = vmatprep.subr.mxu0 0.0
    %699 = vmatpush1.msra.mxu0 0.0
    %700 = vmatprep.subr.mxu0 0.0
    %701 = vmatpush1.msra.mxu0 0.0
    %702 = vmatprep.subr.mxu0 0.0
    %703 = vmatpush1.msra.mxu0 0.0
    %704 = vmatprep.subr.mxu0 0.0
    %705 = vmatpush1.msra.mxu0 0.0
    %706 = vmatprep.subr.mxu0 0.0
    %707 = vmatpush1.msra.mxu0 0.0
    %708 = vmatprep.subr.mxu0 0.0
    %709 = vmatpush1.msra.mxu0 0.0
    %710 = vmatprep.subr.mxu0 0.0
    %711 = vmatpush1.msra.mxu0 0.0
    %712 = vmatprep.subr.mxu0 0.0
    %713 = vmatpush1.msra.mxu0 0.0
    %714 = vmatprep.subr.mxu0 0.0
    %715 = vmatpush1.msra.mxu0 0.0
    %716 = vmatprep.subr.mxu0 0.0
    %717 = vmatpush1.msra.mxu0 0.0
    %718 = vmatprep.subr.mxu0 0.0
    %719 = vmatpush1.msra.mxu0 0.0
    %720 = vmatprep.subr.mxu0 0.0
    %721 = vmatpush1.msra.mxu0 0.0
    %722 = vmatprep.subr.mxu0 0.0
    %723 = vmatpush1.msra.mxu0 0.0
    %724 = vmatprep.subr.mxu0 0.0
    %725 = vmatpush1.msra.mxu0 0.0
    %726 = vmatprep.subr.mxu0 0.0
    %727 = vmatpush1.msra.mxu0 0.0
    %728 = vmatprep.subr.mxu0 0.0
    %729 = vmatpush1.msra.mxu0 0.0
    %730 = vmatprep.subr.mxu0 0.0
    %731 = vmatpush1.msra.mxu0 0.0
    %732 = vmatprep.subr.mxu0 0.0
    %733 = vmatpush1.msra.mxu0 0.0
    %734 = vmatprep.subr.mxu0 0.0
    %735 = vmatpush1.msra.mxu0 0.0
    %736 = vmatprep.subr.mxu0 0.0
    %737 = vmatpush1.msra.mxu0 0.0
    %738 = vmatprep.subr.mxu0 0.0
    %739 = vmatpush1.msra.mxu0 0.0
    %740 = vmatprep.subr.mxu0 0.0
    %741 = vmatpush1.msra.mxu0 0.0
    %742 = vmatprep.subr.mxu0 0.0
    %743 = vmatpush1.msra.mxu0 0.0
    %744 = vmatprep.subr.mxu0 0.0
    %745 = vmatpush1.msra.mxu0 0.0
    %746 = vmatprep.subr.mxu0 0.0
    %747 = vmatpush1.msra.mxu0 0.0
    %748 = vmatprep.subr.mxu0 0.0
    %749 = vmatpush1.msra.mxu0 0.0
    %750 = vmatprep.mubr.f32.mxu0 0.0
    %751 = vmatmul.mubr.f32.gmra.mrb[0].mxu0 %v684
    %v752 = vpop.f32.mrb[0].mxu0
    %v753 = vadd.f32 0.0, %v752
    %v754 = vpop.f32.mrb[0].mxu0
    %755 = vdwg.mxu0
    %v756 = vsel %vm575, %v597, 0
    %758 = vmatprep.subr.mxu0 0.0
    %759 = vmatpush1.msra.mxu0 %v407
    %760 = vmatprep.subr.mxu0 0.0
    %761 = vmatpush1.msra.mxu0 %v412
    %762 = vmatprep.subr.mxu0 0.0
    %763 = vmatpush1.msra.mxu0 0.0
    %764 = vmatprep.subr.mxu0 0.0
    %765 = vmatpush1.msra.mxu0 0.0
    %766 = vmatprep.subr.mxu0 0.0
    %767 = vmatpush1.msra.mxu0 0.0
    %768 = vmatprep.subr.mxu0 0.0
    %769 = vmatpush1.msra.mxu0 0.0
    %770 = vmatprep.subr.mxu0 0.0
    %771 = vmatpush1.msra.mxu0 0.0
    %772 = vmatprep.subr.mxu0 0.0
    %773 = vmatpush1.msra.mxu0 0.0
    %774 = vmatprep.subr.mxu0 0.0
    %775 = vmatpush1.msra.mxu0 0.0
    %776 = vmatprep.subr.mxu0 0.0
    %777 = vmatpush1.msra.mxu0 0.0
    %778 = vmatprep.subr.mxu0 0.0
    %779 = vmatpush1.msra.mxu0 0.0
    %780 = vmatprep.subr.mxu0 0.0
    %781 = vmatpush1.msra.mxu0 0.0
    %782 = vmatprep.subr.mxu0 0.0
    %783 = vmatpush1.msra.mxu0 0.0
    %784 = vmatprep.subr.mxu0 0.0
    %785 = vmatpush1.msra.mxu0 0.0
    %786 = vmatprep.subr.mxu0 0.0
    %787 = vmatpush1.msra.mxu0 0.0
    %788 = vmatprep.subr.mxu0 0.0
    %789 = vmatpush1.msra.mxu0 0.0
    %790 = vmatprep.subr.mxu0 0.0
    %791 = vmatpush1.msra.mxu0 0.0
    %792 = vmatprep.subr.mxu0 0.0
    %793 = vmatpush1.msra.mxu0 0.0
    %794 = vmatprep.subr.mxu0 0.0
    %795 = vmatpush1.msra.mxu0 0.0
    %796 = vmatprep.subr.mxu0 0.0
    %797 = vmatpush1.msra.mxu0 0.0
    %798 = vmatprep.subr.mxu0 0.0
    %799 = vmatpush1.msra.mxu0 0.0
    %800 = vmatprep.subr.mxu0 0.0
    %801 = vmatpush1.msra.mxu0 0.0
    %802 = vmatprep.subr.mxu0 0.0
    %803 = vmatpush1.msra.mxu0 0.0
    %804 = vmatprep.subr.mxu0 0.0
    %805 = vmatpush1.msra.mxu0 0.0
    %806 = vmatprep.subr.mxu0 0.0
    %807 = vmatpush1.msra.mxu0 0.0
    %808 = vmatprep.subr.mxu0 0.0
    %809 = vmatpush1.msra.mxu0 0.0
    %810 = vmatprep.subr.mxu0 0.0
    %811 = vmatpush1.msra.mxu0 0.0
    %812 = vmatprep.subr.mxu0 0.0
    %813 = vmatpush1.msra.mxu0 0.0
    %814 = vmatprep.subr.mxu0 0.0
    %815 = vmatpush1.msra.mxu0 0.0
    %816 = vmatprep.subr.mxu0 0.0
    %817 = vmatpush1.msra.mxu0 0.0
    %818 = vmatprep.subr.mxu0 0.0
    %819 = vmatpush1.msra.mxu0 0.0
    %820 = vmatprep.subr.mxu0 0.0
    %821 = vmatpush1.msra.mxu0 0.0
    %822 = vmatprep.mubr.f32.mxu0 0.0
    %823 = vmatmul.mubr.f32.gmra.mrb[0].mxu0 %v756
    %v824 = vpop.f32.mrb[0].mxu0
    %v825 = vadd.f32 0.0, %v824
    %v826 = vpop.f32.mrb[0].mxu0
    %827 = vdwg.mxu0
    %828 = vrot.lane.b32.xlu0 %v219, 120
    %v829 = vpop.permute.xlu0 %828
    %830 = vrot.lane.b32.xlu0 %v300, 120
    %v831 = vpop.permute.xlu0 %830
    %832 = vrot.lane.b32.xlu0 %v305, 120
    %v833 = vpop.permute.xlu0 %832
    %v834 = vsel %vm416, %v829, 0
    %v836 = vsel %vm416, %v831, 0
    %v838 = vsel %vm416, %v833, 0
    %840 = vmatprep.subr.mxu0 0.0
    %841 = vmatpush1.xpose.msra.mxu0 %v836
    %842 = vmatprep.subr.mxu0 0.0
    %843 = vmatpush1.xpose.msra.mxu0 %v838
    %844 = vmatprep.subr.mxu0 0.0
    %845 = vmatpush1.xpose.msra.mxu0 0.0
    %846 = vmatprep.subr.mxu0 0.0
    %847 = vmatpush1.xpose.msra.mxu0 0.0
    %848 = vmatprep.subr.mxu0 0.0
    %849 = vmatpush1.xpose.msra.mxu0 0.0
    %850 = vmatprep.subr.mxu0 0.0
    %851 = vmatpush1.xpose.msra.mxu0 0.0
    %852 = vmatprep.subr.mxu0 0.0
    %853 = vmatpush1.xpose.msra.mxu0 0.0
    %854 = vmatprep.subr.mxu0 0.0
    %855 = vmatpush1.xpose.msra.mxu0 0.0
    %856 = vmatprep.subr.mxu0 0.0
    %857 = vmatpush1.xpose.msra.mxu0 0.0
    %858 = vmatprep.subr.mxu0 0.0
    %859 = vmatpush1.xpose.msra.mxu0 0.0
    %860 = vmatprep.subr.mxu0 0.0
    %861 = vmatpush1.xpose.msra.mxu0 0.0
    %862 = vmatprep.subr.mxu0 0.0
    %863 = vmatpush1.xpose.msra.mxu0 0.0
    %864 = vmatprep.subr.mxu0 0.0
    %865 = vmatpush1.xpose.msra.mxu0 0.0
    %866 = vmatprep.subr.mxu0 0.0
    %867 = vmatpush1.xpose.msra.mxu0 0.0
    %868 = vmatprep.subr.mxu0 0.0
    %869 = vmatpush1.xpose.msra.mxu0 0.0
    %870 = vmatprep.subr.mxu0 0.0
    %871 = vmatpush1.xpose.msra.mxu0 0.0
    %872 = vmatprep.subr.mxu0 0.0
    %873 = vmatpush1.xpose.msra.mxu0 0.0
    %874 = vmatprep.subr.mxu0 0.0
    %875 = vmatpush1.xpose.msra.mxu0 0.0
    %876 = vmatprep.subr.mxu0 0.0
    %877 = vmatpush1.xpose.msra.mxu0 0.0
    %878 = vmatprep.subr.mxu0 0.0
    %879 = vmatpush1.xpose.msra.mxu0 0.0
    %880 = vmatprep.subr.mxu0 0.0
    %881 = vmatpush1.xpose.msra.mxu0 0.0
    %882 = vmatprep.subr.mxu0 0.0
    %883 = vmatpush1.xpose.msra.mxu0 0.0
    %884 = vmatprep.subr.mxu0 0.0
    %885 = vmatpush1.xpose.msra.mxu0 0.0
    %886 = vmatprep.subr.mxu0 0.0
    %887 = vmatpush1.xpose.msra.mxu0 0.0
    %888 = vmatprep.subr.mxu0 0.0
    %889 = vmatpush1.xpose.msra.mxu0 0.0
    %890 = vmatprep.subr.mxu0 0.0
    %891 = vmatpush1.xpose.msra.mxu0 0.0
    %892 = vmatprep.subr.mxu0 0.0
    %893 = vmatpush1.xpose.msra.mxu0 0.0
    %894 = vmatprep.subr.mxu0 0.0
    %895 = vmatpush1.xpose.msra.mxu0 0.0
    %896 = vmatprep.subr.mxu0 0.0
    %897 = vmatpush1.xpose.msra.mxu0 0.0
    %898 = vmatprep.subr.mxu0 0.0
    %899 = vmatpush1.xpose.msra.mxu0 0.0
    %900 = vmatprep.subr.mxu0 0.0
    %901 = vmatpush1.xpose.msra.mxu0 0.0
    %902 = vmatprep.subr.mxu0 0.0
    %903 = vmatpush1.xpose.msra.mxu0 0.0
    %904 = vmatprep.mubr.f32.mxu0 0.0
    %905 = vmatmul.mubr.f32.gmra.mrb[0].mxu0 %v834
    %v906 = vpop.f32.mrb[0].mxu0
    %v907 = vadd.f32 %v415, %v906
    %v908 = vpop.f32.mrb[0].mxu0
    %909 = vdwg.mxu0
    %910 = vrot.lane.b32.xlu0 %v220, 120
    %v911 = vpop.permute.xlu0 %910
    %912 = vrot.lane.b32.xlu0 %v310, 120
    %v913 = vpop.permute.xlu0 %912
    %914 = vrot.lane.b32.xlu0 %v315, 120
    %v915 = vpop.permute.xlu0 %914
    %v916 = vsel %vm416, %v911, 0
    %v918 = vsel %vm416, %v913, 0
    %v920 = vsel %vm416, %v915, 0
    %922 = vmatprep.subr.mxu0 0.0
    %923 = vmatpush1.xpose.msra.mxu0 %v918
    %924 = vmatprep.subr.mxu0 0.0
    %925 = vmatpush1.xpose.msra.mxu0 %v920
    %926 = vmatprep.subr.mxu0 0.0
    %927 = vmatpush1.xpose.msra.mxu0 0.0
    %928 = vmatprep.subr.mxu0 0.0
    %929 = vmatpush1.xpose.msra.mxu0 0.0
    %930 = vmatprep.subr.mxu0 0.0
    %931 = vmatpush1.xpose.msra.mxu0 0.0
    %932 = vmatprep.subr.mxu0 0.0
    %933 = vmatpush1.xpose.msra.mxu0 0.0
    %934 = vmatprep.subr.mxu0 0.0
    %935 = vmatpush1.xpose.msra.mxu0 0.0
    %936 = vmatprep.subr.mxu0 0.0
    %937 = vmatpush1.xpose.msra.mxu0 0.0
    %938 = vmatprep.subr.mxu0 0.0
    %939 = vmatpush1.xpose.msra.mxu0 0.0
    %940 = vmatprep.subr.mxu0 0.0
    %941 = vmatpush1.xpose.msra.mxu0 0.0
    %942 = vmatprep.subr.mxu0 0.0
    %943 = vmatpush1.xpose.msra.mxu0 0.0
    %944 = vmatprep.subr.mxu0 0.0
    %945 = vmatpush1.xpose.msra.mxu0 0.0
    %946 = vmatprep.subr.mxu0 0.0
    %947 = vmatpush1.xpose.msra.mxu0 0.0
    %948 = vmatprep.subr.mxu0 0.0
    %949 = vmatpush1.xpose.msra.mxu0 0.0
    %950 = vmatprep.subr.mxu0 0.0
    %951 = vmatpush1.xpose.msra.mxu0 0.0
    %952 = vmatprep.subr.mxu0 0.0
    %953 = vmatpush1.xpose.msra.mxu0 0.0
    %954 = vmatprep.subr.mxu0 0.0
    %955 = vmatpush1.xpose.msra.mxu0 0.0
    %956 = vmatprep.subr.mxu0 0.0
    %957 = vmatpush1.xpose.msra.mxu0 0.0
    %958 = vmatprep.subr.mxu0 0.0
    %959 = vmatpush1.xpose.msra.mxu0 0.0
    %960 = vmatprep.subr.mxu0 0.0
    %961 = vmatpush1.xpose.msra.mxu0 0.0
    %962 = vmatprep.subr.mxu0 0.0
    %963 = vmatpush1.xpose.msra.mxu0 0.0
    %964 = vmatprep.subr.mxu0 0.0
    %965 = vmatpush1.xpose.msra.mxu0 0.0
    %966 = vmatprep.subr.mxu0 0.0
    %967 = vmatpush1.xpose.msra.mxu0 0.0
    %968 = vmatprep.subr.mxu0 0.0
    %969 = vmatpush1.xpose.msra.mxu0 0.0
    %970 = vmatprep.subr.mxu0 0.0
    %971 = vmatpush1.xpose.msra.mxu0 0.0
    %972 = vmatprep.subr.mxu0 0.0
    %973 = vmatpush1.xpose.msra.mxu0 0.0
    %974 = vmatprep.subr.mxu0 0.0
    %975 = vmatpush1.xpose.msra.mxu0 0.0
    %976 = vmatprep.subr.mxu0 0.0
    %977 = vmatpush1.xpose.msra.mxu0 0.0
    %978 = vmatprep.subr.mxu0 0.0
    %979 = vmatpush1.xpose.msra.mxu0 0.0
    %980 = vmatprep.subr.mxu0 0.0
    %981 = vmatpush1.xpose.msra.mxu0 0.0
    %982 = vmatprep.subr.mxu0 0.0
    %983 = vmatpush1.xpose.msra.mxu0 0.0
    %984 = vmatprep.subr.mxu0 0.0
    %985 = vmatpush1.xpose.msra.mxu0 0.0
    %986 = vmatprep.mubr.f32.mxu0 0.0
    %987 = vmatmul.mubr.f32.gmra.mrb[0].mxu0 %v916
    %v988 = vpop.f32.mrb[0].mxu0
    %v989 = vadd.f32 %v415, %v988
    %v990 = vpop.f32.mrb[0].mxu0
    %991 = vdwg.mxu0
    %v992 = vsel %vm575, %v907, -inf
    %993 = vmax.xlane.f32.xlu0 %v992
    %v994 = vpop.xlane.xlu0 %993
    %v995 = vsel %vm575, %v989, -inf
    %996 = vmax.xlane.f32.xlu0 %v995
    %v997 = vpop.xlane.xlu0 %996
    %v998 = vsub.f32 %v907, %v994
    %v999 = vsub.f32 %v989, %v997
    %v1000 = vmul.f32 %v998, 1.442695
    %v1001 = vpow.pop %v1000
    %v1002 = vmul.f32 %v999, 1.442695
    %v1003 = vpow.pop %v1002
    %v1004 = vsel %vm575, %v1001, 0.0
    %1005 = vadd.xlane.f32.xlu0 %v1004
    %v1006 = vpop.xlane.xlu0 %1005
    %v1007 = vsel %vm575, %v1003, 0.0
    %1008 = vadd.xlane.f32.xlu0 %v1007
    %v1009 = vpop.xlane.xlu0 %1008
    %v1010 = vrcp.pop %v1006
    %v1011 = vmul.f32 %v1001, %v1010
    %v1012 = vrcp.pop %v1009
    %v1013 = vmul.f32 %v1003, %v1012
    %v1016 = vrot.slane %v1013, 7
    %v1017 = vsel %vm601, %v1016, %v1011
    %v1019 = vrot.slane %v1011, 1
    %v1020 = vsel %vm601, %v1013, %v1019
    %1021 = vrot.lane.b32.xlu0 %v1020, 16
    %v1022 = vpop.permute.xlu0 %1021
    %v1024 = vrot.slane %v1011, 2
    %v1025 = vrot.slane %v1013, 1
    %v1026 = vsel %vm601, %v1025, %v1024
    %1027 = vrot.lane.b32.xlu0 %v1026, 32
    %v1028 = vpop.permute.xlu0 %1027
    %v1030 = vrot.slane %v1011, 3
    %v1031 = vrot.slane %v1013, 2
    %v1032 = vsel %vm601, %v1031, %v1030
    %1033 = vrot.lane.b32.xlu0 %v1032, 48
    %v1034 = vpop.permute.xlu0 %1033
    %v1036 = vrot.slane %v1011, 4
    %v1037 = vrot.slane %v1013, 3
    %v1038 = vsel %vm601, %v1037, %v1036
    %1039 = vrot.lane.b32.xlu0 %v1038, 64
    %v1040 = vpop.permute.xlu0 %1039
    %v1042 = vrot.slane %v1011, 5
    %v1043 = vrot.slane %v1013, 4
    %v1044 = vsel %vm601, %v1043, %v1042
    %1045 = vrot.lane.b32.xlu0 %v1044, 80
    %v1046 = vpop.permute.xlu0 %1045
    %v1048 = vrot.slane %v1011, 6
    %v1049 = vrot.slane %v1013, 5
    %v1050 = vsel %vm601, %v1049, %v1048
    %1051 = vrot.lane.b32.xlu0 %v1050, 96
    %v1052 = vpop.permute.xlu0 %1051
    %v1054 = vrot.slane %v1011, 7
    %v1055 = vrot.slane %v1013, 6
    %v1056 = vsel %vm601, %v1055, %v1054
    %1057 = vrot.lane.b32.xlu0 %v1056, 112
    %v1058 = vpop.permute.xlu0 %1057
    %v1060 = vsel %vm575, %v1017, %v1022
    %v1061 = vsel %vm137, %v1060, %v1028
    %v1062 = vsel %vm647, %v1061, %v1034
    %v1063 = vsel %vm649, %v1062, %v1040
    %v1064 = vsel %vm651, %v1063, %v1046
    %v1065 = vsel %vm653, %v1064, %v1052
    %v1066 = vsel %vm655, %v1065, %v1058
    %v1069 = vunpack.c.l.s4 1966171168
    %v1070 = vunpack.c.0.s8 %v1069
    %v1071 = vlaneseq
    %v1072 = vshrl.u32 %v1071, 7
    %v1073 = vsub.s32 %v1070, %v1072
    %v1074 = vrot.slane %v1066, %v1073
    %v1075 = vcombine.high %v1074, %v1074
    %v1077 = vunpack.c.l.s4 1966171168
    %v1078 = vunpack.c.0.s8 %v1077
    %v1079 = vlaneseq
    %v1080 = vshrl.u32 %v1079, 7
    %v1081 = vsub.s32 %v1078, %v1080
    %v1082 = vrot.slane %v1074, %v1081
    %v1084 = vunpack.c.l.s4 1966171168
    %v1085 = vunpack.c.0.s8 %v1084
    %v1086 = vlaneseq
    %v1087 = vshrl.u32 %v1086, 7
    %v1088 = vsub.s32 %v1085, %v1087
    %v1089 = vrot.slane %v1075, %v1088
    %1092 = vst [vmem:[#allocation14 + $0x1] sm:$0x1] %v1082
    %1093 = vst [vmem:[#allocation14 + $0x5] sm:$0x1] %v1089
    %1096 = vrot.lane.b32.xlu0 %v397, 120
    %v1097 = vpop.permute.xlu0 %1096
    %1098 = vrot.lane.b32.xlu0 %v402, 120
    %v1099 = vpop.permute.xlu0 %1098
    %v1102 = vsel %vm575, %v1011, 0
    %1104 = vmatprep.subr.mxu0 0.0
    %1105 = vmatpush1.msra.mxu0 %v1097
    %1106 = vmatprep.subr.mxu0 0.0
    %1107 = vmatpush1.msra.mxu0 %v1099
    %1108 = vmatprep.subr.mxu0 0.0
    %1109 = vmatpush1.msra.mxu0 0.0
    %1110 = vmatprep.subr.mxu0 0.0
    %1111 = vmatpush1.msra.mxu0 0.0
    %1112 = vmatprep.subr.mxu0 0.0
    %1113 = vmatpush1.msra.mxu0 0.0
    %1114 = vmatprep.subr.mxu0 0.0
    %1115 = vmatpush1.msra.mxu0 0.0
    %1116 = vmatprep.subr.mxu0 0.0
    %1117 = vmatpush1.msra.mxu0 0.0
    %1118 = vmatprep.subr.mxu0 0.0
    %1119 = vmatpush1.msra.mxu0 0.0
    %1120 = vmatprep.subr.mxu0 0.0
    %1121 = vmatpush1.msra.mxu0 0.0
    %1122 = vmatprep.subr.mxu0 0.0
    %1123 = vmatpush1.msra.mxu0 0.0
    %1124 = vmatprep.subr.mxu0 0.0
    %1125 = vmatpush1.msra.mxu0 0.0
    %1126 = vmatprep.subr.mxu0 0.0
    %1127 = vmatpush1.msra.mxu0 0.0
    %1128 = vmatprep.subr.mxu0 0.0
    %1129 = vmatpush1.msra.mxu0 0.0
    %1130 = vmatprep.subr.mxu0 0.0
    %1131 = vmatpush1.msra.mxu0 0.0
    %1132 = vmatprep.subr.mxu0 0.0
    %1133 = vmatpush1.msra.mxu0 0.0
    %1134 = vmatprep.subr.mxu0 0.0
    %1135 = vmatpush1.msra.mxu0 0.0
    %1136 = vmatprep.subr.mxu0 0.0
    %1137 = vmatpush1.msra.mxu0 0.0
    %1138 = vmatprep.subr.mxu0 0.0
    %1139 = vmatpush1.msra.mxu0 0.0
    %1140 = vmatprep.subr.mxu0 0.0
    %1141 = vmatpush1.msra.mxu0 0.0
    %1142 = vmatprep.subr.mxu0 0.0
    %1143 = vmatpush1.msra.mxu0 0.0
    %1144 = vmatprep.subr.mxu0 0.0
    %1145 = vmatpush1.msra.mxu0 0.0
    %1146 = vmatprep.subr.mxu0 0.0
    %1147 = vmatpush1.msra.mxu0 0.0
    %1148 = vmatprep.subr.mxu0 0.0
    %1149 = vmatpush1.msra.mxu0 0.0
    %1150 = vmatprep.subr.mxu0 0.0
    %1151 = vmatpush1.msra.mxu0 0.0
    %1152 = vmatprep.subr.mxu0 0.0
    %1153 = vmatpush1.msra.mxu0 0.0
    %1154 = vmatprep.subr.mxu0 0.0
    %1155 = vmatpush1.msra.mxu0 0.0
    %1156 = vmatprep.subr.mxu0 0.0
    %1157 = vmatpush1.msra.mxu0 0.0
    %1158 = vmatprep.subr.mxu0 0.0
    %1159 = vmatpush1.msra.mxu0 0.0
    %1160 = vmatprep.subr.mxu0 0.0
    %1161 = vmatpush1.msra.mxu0 0.0
    %1162 = vmatprep.subr.mxu0 0.0
    %1163 = vmatpush1.msra.mxu0 0.0
    %1164 = vmatprep.subr.mxu0 0.0
    %1165 = vmatpush1.msra.mxu0 0.0
    %1166 = vmatprep.subr.mxu0 0.0
    %1167 = vmatpush1.msra.mxu0 0.0
    %1168 = vmatprep.mubr.f32.mxu0 0.0
    %1169 = vmatmul.mubr.f32.gmra.mrb[0].mxu0 %v1102
    %v1170 = vpop.f32.mrb[0].mxu0
    %v1171 = vadd.f32 0.0, %v1170
    %v1172 = vpop.f32.mrb[0].mxu0
    %1173 = vdwg.mxu0
    %1176 = vrot.lane.b32.xlu0 %v407, 120
    %v1177 = vpop.permute.xlu0 %1176
    %1178 = vrot.lane.b32.xlu0 %v412, 120
    %v1179 = vpop.permute.xlu0 %1178
    %v1182 = vsel %vm575, %v1013, 0
    %1184 = vmatprep.subr.mxu0 0.0
    %1185 = vmatpush1.msra.mxu0 %v1177
    %1186 = vmatprep.subr.mxu0 0.0
    %1187 = vmatpush1.msra.mxu0 %v1179
    %1188 = vmatprep.subr.mxu0 0.0
    %1189 = vmatpush1.msra.mxu0 0.0
    %1190 = vmatprep.subr.mxu0 0.0
    %1191 = vmatpush1.msra.mxu0 0.0
    %1192 = vmatprep.subr.mxu0 0.0
    %1193 = vmatpush1.msra.mxu0 0.0
    %1194 = vmatprep.subr.mxu0 0.0
    %1195 = vmatpush1.msra.mxu0 0.0
    %1196 = vmatprep.subr.mxu0 0.0
    %1197 = vmatpush1.msra.mxu0 0.0
    %1198 = vmatprep.subr.mxu0 0.0
    %1199 = vmatpush1.msra.mxu0 0.0
    %1200 = vmatprep.subr.mxu0 0.0
    %1201 = vmatpush1.msra.mxu0 0.0
    %1202 = vmatprep.subr.mxu0 0.0
    %1203 = vmatpush1.msra.mxu0 0.0
    %1204 = vmatprep.subr.mxu0 0.0
    %1205 = vmatpush1.msra.mxu0 0.0
    %1206 = vmatprep.subr.mxu0 0.0
    %1207 = vmatpush1.msra.mxu0 0.0
    %1208 = vmatprep.subr.mxu0 0.0
    %1209 = vmatpush1.msra.mxu0 0.0
    %1210 = vmatprep.subr.mxu0 0.0
    %1211 = vmatpush1.msra.mxu0 0.0
    %1212 = vmatprep.subr.mxu0 0.0
    %1213 = vmatpush1.msra.mxu0 0.0
    %1214 = vmatprep.subr.mxu0 0.0
    %1215 = vmatpush1.msra.mxu0 0.0
    %1216 = vmatprep.subr.mxu0 0.0
    %1217 = vmatpush1.msra.mxu0 0.0
    %1218 = vmatprep.subr.mxu0 0.0
    %1219 = vmatpush1.msra.mxu0 0.0
    %1220 = vmatprep.subr.mxu0 0.0
    %1221 = vmatpush1.msra.mxu0 0.0
    %1222 = vmatprep.subr.mxu0 0.0
    %1223 = vmatpush1.msra.mxu0 0.0
    %1224 = vmatprep.subr.mxu0 0.0
    %1225 = vmatpush1.msra.mxu0 0.0
    %1226 = vmatprep.subr.mxu0 0.0
    %1227 = vmatpush1.msra.mxu0 0.0
    %1228 = vmatprep.subr.mxu0 0.0
    %1229 = vmatpush1.msra.mxu0 0.0
    %1230 = vmatprep.subr.mxu0 0.0
    %1231 = vmatpush1.msra.mxu0 0.0
    %1232 = vmatprep.subr.mxu0 0.0
    %1233 = vmatpush1.msra.mxu0 0.0
    %1234 = vmatprep.subr.mxu0 0.0
    %1235 = vmatpush1.msra.mxu0 0.0
    %1236 = vmatprep.subr.mxu0 0.0
    %1237 = vmatpush1.msra.mxu0 0.0
    %1238 = vmatprep.subr.mxu0 0.0
    %1239 = vmatpush1.msra.mxu0 0.0
    %1240 = vmatprep.subr.mxu0 0.0
    %1241 = vmatpush1.msra.mxu0 0.0
    %1242 = vmatprep.subr.mxu0 0.0
    %1243 = vmatpush1.msra.mxu0 0.0
    %1244 = vmatprep.subr.mxu0 0.0
    %1245 = vmatpush1.msra.mxu0 0.0
    %1246 = vmatprep.subr.mxu0 0.0
    %1247 = vmatpush1.msra.mxu0 0.0
    %1248 = vmatprep.mubr.f32.mxu0 0.0
    %1249 = vmatmul.mubr.f32.gmra.mrb[0].mxu0 %v1182
    %v1250 = vpop.f32.mrb[0].mxu0
    %v1251 = vadd.f32 0.0, %v1250
    %v1252 = vpop.f32.mrb[0].mxu0
    %1253 = vdwg.mxu0
    %v1255 = vsel %vm416, %v1171, 0
    %v1258 = vsel %vm416, %v1251, 0
    %1260 = vmatprep.subr.mxu0 0.0
    %1261 = vmatpush1.msra.mxu0 %v134
    %1262 = vmatprep.subr.mxu0 0.0
    %1263 = vmatpush1.msra.mxu0 0.0
    %1264 = vmatprep.subr.mxu0 0.0
    %1265 = vmatpush1.msra.mxu0 0.0
    %1266 = vmatprep.subr.mxu0 0.0
    %1267 = vmatpush1.msra.mxu0 0.0
    %1268 = vmatprep.subr.mxu0 0.0
    %1269 = vmatpush1.msra.mxu0 0.0
    %1270 = vmatprep.subr.mxu0 0.0
    %1271 = vmatpush1.msra.mxu0 0.0
    %1272 = vmatprep.subr.mxu0 0.0
    %1273 = vmatpush1.msra.mxu0 0.0
    %1274 = vmatprep.subr.mxu0 0.0
    %1275 = vmatpush1.msra.mxu0 0.0
    %1276 = vmatprep.subr.mxu0 0.0
    %1277 = vmatpush1.msra.mxu0 0.0
    %1278 = vmatprep.subr.mxu0 0.0
    %1279 = vmatpush1.msra.mxu0 0.0
    %1280 = vmatprep.subr.mxu0 0.0
    %1281 = vmatpush1.msra.mxu0 0.0
    %1282 = vmatprep.subr.mxu0 0.0
    %1283 = vmatpush1.msra.mxu0 0.0
    %1284 = vmatprep.subr.mxu0 0.0
    %1285 = vmatpush1.msra.mxu0 0.0
    %1286 = vmatprep.subr.mxu0 0.0
    %1287 = vmatpush1.msra.mxu0 0.0
    %1288 = vmatprep.subr.mxu0 0.0
    %1289 = vmatpush1.msra.mxu0 0.0
    %1290 = vmatprep.subr.mxu0 0.0
    %1291 = vmatpush1.msra.mxu0 0.0
    %1292 = vmatprep.subr.mxu0 0.0
    %1293 = vmatpush1.msra.mxu0 0.0
    %1294 = vmatprep.subr.mxu0 0.0
    %1295 = vmatpush1.msra.mxu0 0.0
    %1296 = vmatprep.subr.mxu0 0.0
    %1297 = vmatpush1.msra.mxu0 0.0
    %1298 = vmatprep.subr.mxu0 0.0
    %1299 = vmatpush1.msra.mxu0 0.0
    %1300 = vmatprep.subr.mxu0 0.0
    %1301 = vmatpush1.msra.mxu0 0.0
    %1302 = vmatprep.subr.mxu0 0.0
    %1303 = vmatpush1.msra.mxu0 0.0
    %1304 = vmatprep.subr.mxu0 0.0
    %1305 = vmatpush1.msra.mxu0 0.0
    %1306 = vmatprep.subr.mxu0 0.0
    %1307 = vmatpush1.msra.mxu0 0.0
    %1308 = vmatprep.subr.mxu0 0.0
    %1309 = vmatpush1.msra.mxu0 0.0
    %1310 = vmatprep.subr.mxu0 0.0
    %1311 = vmatpush1.msra.mxu0 0.0
    %1312 = vmatprep.subr.mxu0 0.0
    %1313 = vmatpush1.msra.mxu0 0.0
    %1314 = vmatprep.subr.mxu0 0.0
    %1315 = vmatpush1.msra.mxu0 0.0
    %1316 = vmatprep.subr.mxu0 0.0
    %1317 = vmatpush1.msra.mxu0 0.0
    %1318 = vmatprep.subr.mxu0 0.0
    %1319 = vmatpush1.msra.mxu0 0.0
    %1320 = vmatprep.subr.mxu0 0.0
    %1321 = vmatpush1.msra.mxu0 0.0
    %1322 = vmatprep.subr.mxu0 0.0
    %1323 = vmatpush1.msra.mxu0 0.0
    %1324 = vmatprep.mubr.f32.mxu0 0.0
    %1325 = vmatmul.mubr.f32.gmra.mrb[0].mxu0 %v1255
    %v1326 = vpop.f32.mrb[0].mxu0
    %v1327 = vadd.f32 0.0, %v1326
    %v1328 = vpop.f32.mrb[0].mxu0
    %1329 = vmatprep.mubr.f32.mxu0 0.0
    %1330 = vmatmul.mubr.f32.gmra.mrb[0].mxu0 %v1258
    %v1331 = vpop.f32.mrb[0].mxu0
    %v1332 = vadd.f32 0.0, %v1331
    %v1333 = vpop.f32.mrb[0].mxu0
    %1334 = vdwg.mxu0
    %v1336 = vsel %vm416, %v753, 0
    %v1339 = vsel %vm416, %v825, 0
    %1341 = vmatprep.subr.mxu0 0.0
    %1342 = vmatpush1.msra.mxu0 %v133
    %1343 = vmatprep.subr.mxu0 0.0
    %1344 = vmatpush1.msra.mxu0 0.0
    %1345 = vmatprep.subr.mxu0 0.0
    %1346 = vmatpush1.msra.mxu0 0.0
    %1347 = vmatprep.subr.mxu0 0.0
    %1348 = vmatpush1.msra.mxu0 0.0
    %1349 = vmatprep.subr.mxu0 0.0
    %1350 = vmatpush1.msra.mxu0 0.0
    %1351 = vmatprep.subr.mxu0 0.0
    %1352 = vmatpush1.msra.mxu0 0.0
    %1353 = vmatprep.subr.mxu0 0.0
    %1354 = vmatpush1.msra.mxu0 0.0
    %1355 = vmatprep.subr.mxu0 0.0
    %1356 = vmatpush1.msra.mxu0 0.0
    %1357 = vmatprep.subr.mxu0 0.0
    %1358 = vmatpush1.msra.mxu0 0.0
    %1359 = vmatprep.subr.mxu0 0.0
    %1360 = vmatpush1.msra.mxu0 0.0
    %1361 = vmatprep.subr.mxu0 0.0
    %1362 = vmatpush1.msra.mxu0 0.0
    %1363 = vmatprep.subr.mxu0 0.0
    %1364 = vmatpush1.msra.mxu0 0.0
    %1365 = vmatprep.subr.mxu0 0.0
    %1366 = vmatpush1.msra.mxu0 0.0
    %1367 = vmatprep.subr.mxu0 0.0
    %1368 = vmatpush1.msra.mxu0 0.0
    %1369 = vmatprep.subr.mxu0 0.0
    %1370 = vmatpush1.msra.mxu0 0.0
    %1371 = vmatprep.subr.mxu0 0.0
    %1372 = vmatpush1.msra.mxu0 0.0
    %1373 = vmatprep.subr.mxu0 0.0
    %1374 = vmatpush1.msra.mxu0 0.0
    %1375 = vmatprep.subr.mxu0 0.0
    %1376 = vmatpush1.msra.mxu0 0.0
    %1377 = vmatprep.subr.mxu0 0.0
    %1378 = vmatpush1.msra.mxu0 0.0
    %1379 = vmatprep.subr.mxu0 0.0
    %1380 = vmatpush1.msra.mxu0 0.0
    %1381 = vmatprep.subr.mxu0 0.0
    %1382 = vmatpush1.msra.mxu0 0.0
    %1383 = vmatprep.subr.mxu0 0.0
    %1384 = vmatpush1.msra.mxu0 0.0
    %1385 = vmatprep.subr.mxu0 0.0
    %1386 = vmatpush1.msra.mxu0 0.0
    %1387 = vmatprep.subr.mxu0 0.0
    %1388 = vmatpush1.msra.mxu0 0.0
    %1389 = vmatprep.subr.mxu0 0.0
    %1390 = vmatpush1.msra.mxu0 0.0
    %1391 = vmatprep.subr.mxu0 0.0
    %1392 = vmatpush1.msra.mxu0 0.0
    %1393 = vmatprep.subr.mxu0 0.0
    %1394 = vmatpush1.msra.mxu0 0.0
    %1395 = vmatprep.subr.mxu0 0.0
    %1396 = vmatpush1.msra.mxu0 0.0
    %1397 = vmatprep.subr.mxu0 0.0
    %1398 = vmatpush1.msra.mxu0 0.0
    %1399 = vmatprep.subr.mxu0 0.0
    %1400 = vmatpush1.msra.mxu0 0.0
    %1401 = vmatprep.subr.mxu0 0.0
    %1402 = vmatpush1.msra.mxu0 0.0
    %1403 = vmatprep.subr.mxu0 0.0
    %1404 = vmatpush1.msra.mxu0 0.0
    %1405 = vmatprep.mubr.f32.mxu0 0.0
    %1406 = vmatmul.mubr.f32.gmra.mrb[0].mxu0 %v1336
    %v1407 = vpop.f32.mrb[0].mxu0
    %v1408 = vadd.f32 %v1327, %v1407
    %v1409 = vpop.f32.mrb[0].mxu0
    %1410 = vmatprep.mubr.f32.mxu0 0.0
    %1411 = vmatmul.mubr.f32.gmra.mrb[0].mxu0 %v1339
    %v1412 = vpop.f32.mrb[0].mxu0
    %v1413 = vadd.f32 %v1332, %v1412
    %v1414 = vpop.f32.mrb[0].mxu0
    %1415 = vdwg.mxu0
    %1416 = vrot.lane.b32.xlu0 %v219, 112
    %v1417 = vpop.permute.xlu0 %1416
    %1418 = vrot.lane.b32.xlu0 %v300, 112
    %v1419 = vpop.permute.xlu0 %1418
    %1420 = vrot.lane.b32.xlu0 %v305, 112
    %v1421 = vpop.permute.xlu0 %1420
    %v1422 = vsel %vm416, %v1417, 0
    %v1424 = vsel %vm416, %v1419, 0
    %v1426 = vsel %vm416, %v1421, 0
    %1428 = vmatprep.subr.mxu0 0.0
    %1429 = vmatpush1.xpose.msra.mxu0 %v1424
    %1430 = vmatprep.subr.mxu0 0.0
    %1431 = vmatpush1.xpose.msra.mxu0 %v1426
    %1432 = vmatprep.subr.mxu0 0.0
    %1433 = vmatpush1.xpose.msra.mxu0 0.0
    %1434 = vmatprep.subr.mxu0 0.0
    %1435 = vmatpush1.xpose.msra.mxu0 0.0
    %1436 = vmatprep.subr.mxu0 0.0
    %1437 = vmatpush1.xpose.msra.mxu0 0.0
    %1438 = vmatprep.subr.mxu0 0.0
    %1439 = vmatpush1.xpose.msra.mxu0 0.0
    %1440 = vmatprep.subr.mxu0 0.0
    %1441 = vmatpush1.xpose.msra.mxu0 0.0
    %1442 = vmatprep.subr.mxu0 0.0
    %1443 = vmatpush1.xpose.msra.mxu0 0.0
    %1444 = vmatprep.subr.mxu0 0.0
    %1445 = vmatpush1.xpose.msra.mxu0 0.0
    %1446 = vmatprep.subr.mxu0 0.0
    %1447 = vmatpush1.xpose.msra.mxu0 0.0
    %1448 = vmatprep.subr.mxu0 0.0
    %1449 = vmatpush1.xpose.msra.mxu0 0.0
    %1450 = vmatprep.subr.mxu0 0.0
    %1451 = vmatpush1.xpose.msra.mxu0 0.0
    %1452 = vmatprep.subr.mxu0 0.0
    %1453 = vmatpush1.xpose.msra.mxu0 0.0
    %1454 = vmatprep.subr.mxu0 0.0
    %1455 = vmatpush1.xpose.msra.mxu0 0.0
    %1456 = vmatprep.subr.mxu0 0.0
    %1457 = vmatpush1.xpose.msra.mxu0 0.0
    %1458 = vmatprep.subr.mxu0 0.0
    %1459 = vmatpush1.xpose.msra.mxu0 0.0
    %1460 = vmatprep.subr.mxu0 0.0
    %1461 = vmatpush1.xpose.msra.mxu0 0.0
    %1462 = vmatprep.subr.mxu0 0.0
    %1463 = vmatpush1.xpose.msra.mxu0 0.0
    %1464 = vmatprep.subr.mxu0 0.0
    %1465 = vmatpush1.xpose.msra.mxu0 0.0
    %1466 = vmatprep.subr.mxu0 0.0
    %1467 = vmatpush1.xpose.msra.mxu0 0.0
    %1468 = vmatprep.subr.mxu0 0.0
    %1469 = vmatpush1.xpose.msra.mxu0 0.0
    %1470 = vmatprep.subr.mxu0 0.0
    %1471 = vmatpush1.xpose.msra.mxu0 0.0
    %1472 = vmatprep.subr.mxu0 0.0
    %1473 = vmatpush1.xpose.msra.mxu0 0.0
    %1474 = vmatprep.subr.mxu0 0.0
    %1475 = vmatpush1.xpose.msra.mxu0 0.0
    %1476 = vmatprep.subr.mxu0 0.0
    %1477 = vmatpush1.xpose.msra.mxu0 0.0
    %1478 = vmatprep.subr.mxu0 0.0
    %1479 = vmatpush1.xpose.msra.mxu0 0.0
    %1480 = vmatprep.subr.mxu0 0.0
    %1481 = vmatpush1.xpose.msra.mxu0 0.0
    %1482 = vmatprep.subr.mxu0 0.0
    %1483 = vmatpush1.xpose.msra.mxu0 0.0
    %1484 = vmatprep.subr.mxu0 0.0
    %1485 = vmatpush1.xpose.msra.mxu0 0.0
    %1486 = vmatprep.subr.mxu0 0.0
    %1487 = vmatpush1.xpose.msra.mxu0 0.0
    %1488 = vmatprep.subr.mxu0 0.0
    %1489 = vmatpush1.xpose.msra.mxu0 0.0
    %1490 = vmatprep.subr.mxu0 0.0
    %1491 = vmatpush1.xpose.msra.mxu0 0.0
    %1492 = vmatprep.mubr.f32.mxu0 0.0
    %1493 = vmatmul.mubr.f32.gmra.mrb[0].mxu0 %v1422
    %v1494 = vpop.f32.mrb[0].mxu0
    %v1495 = vadd.f32 %v415, %v1494
    %v1496 = vpop.f32.mrb[0].mxu0
    %1497 = vdwg.mxu0
    %1498 = vrot.lane.b32.xlu0 %v220, 112
    %v1499 = vpop.permute.xlu0 %1498
    %1500 = vrot.lane.b32.xlu0 %v310, 112
    %v1501 = vpop.permute.xlu0 %1500
    %1502 = vrot.lane.b32.xlu0 %v315, 112
    %v1503 = vpop.permute.xlu0 %1502
    %v1504 = vsel %vm416, %v1499, 0
    %v1506 = vsel %vm416, %v1501, 0
    %v1508 = vsel %vm416, %v1503, 0
    %1510 = vmatprep.subr.mxu0 0.0
    %1511 = vmatpush1.xpose.msra.mxu0 %v1506
    %1512 = vmatprep.subr.mxu0 0.0
    %1513 = vmatpush1.xpose.msra.mxu0 %v1508
    %1514 = vmatprep.subr.mxu0 0.0
    %1515 = vmatpush1.xpose.msra.mxu0 0.0
    %1516 = vmatprep.subr.mxu0 0.0
    %1517 = vmatpush1.xpose.msra.mxu0 0.0
    %1518 = vmatprep.subr.mxu0 0.0
    %1519 = vmatpush1.xpose.msra.mxu0 0.0
    %1520 = vmatprep.subr.mxu0 0.0
    %1521 = vmatpush1.xpose.msra.mxu0 0.0
    %1522 = vmatprep.subr.mxu0 0.0
    %1523 = vmatpush1.xpose.msra.mxu0 0.0
    %1524 = vmatprep.subr.mxu0 0.0
    %1525 = vmatpush1.xpose.msra.mxu0 0.0
    %1526 = vmatprep.subr.mxu0 0.0
    %1527 = vmatpush1.xpose.msra.mxu0 0.0
    %1528 = vmatprep.subr.mxu0 0.0
    %1529 = vmatpush1.xpose.msra.mxu0 0.0
    %1530 = vmatprep.subr.mxu0 0.0
    %1531 = vmatpush1.xpose.msra.mxu0 0.0
    %1532 = vmatprep.subr.mxu0 0.0
    %1533 = vmatpush1.xpose.msra.mxu0 0.0
    %1534 = vmatprep.subr.mxu0 0.0
    %1535 = vmatpush1.xpose.msra.mxu0 0.0
    %1536 = vmatprep.subr.mxu0 0.0
    %1537 = vmatpush1.xpose.msra.mxu0 0.0
    %1538 = vmatprep.subr.mxu0 0.0
    %1539 = vmatpush1.xpose.msra.mxu0 0.0
    %1540 = vmatprep.subr.mxu0 0.0
    %1541 = vmatpush1.xpose.msra.mxu0 0.0
    %1542 = vmatprep.subr.mxu0 0.0
    %1543 = vmatpush1.xpose.msra.mxu0 0.0
    %1544 = vmatprep.subr.mxu0 0.0
    %1545 = vmatpush1.xpose.msra.mxu0 0.0
    %1546 = vmatprep.subr.mxu0 0.0
    %1547 = vmatpush1.xpose.msra.mxu0 0.0
    %1548 = vmatprep.subr.mxu0 0.0
    %1549 = vmatpush1.xpose.msra.mxu0 0.0
    %1550 = vmatprep.subr.mxu0 0.0
    %1551 = vmatpush1.xpose.msra.mxu0 0.0
    %1552 = vmatprep.subr.mxu0 0.0
    %1553 = vmatpush1.xpose.msra.mxu0 0.0
    %1554 = vmatprep.subr.mxu0 0.0
    %1555 = vmatpush1.xpose.msra.mxu0 0.0
    %1556 = vmatprep.subr.mxu0 0.0
    %1557 = vmatpush1.xpose.msra.mxu0 0.0
    %1558 = vmatprep.subr.mxu0 0.0
    %1559 = vmatpush1.xpose.msra.mxu0 0.0
    %1560 = vmatprep.subr.mxu0 0.0
    %1561 = vmatpush1.xpose.msra.mxu0 0.0
    %1562 = vmatprep.subr.mxu0 0.0
    %1563 = vmatpush1.xpose.msra.mxu0 0.0
    %1564 = vmatprep.subr.mxu0 0.0
    %1565 = vmatpush1.xpose.msra.mxu0 0.0
    %1566 = vmatprep.subr.mxu0 0.0
    %1567 = vmatpush1.xpose.msra.mxu0 0.0
    %1568 = vmatprep.subr.mxu0 0.0
    %1569 = vmatpush1.xpose.msra.mxu0 0.0
    %1570 = vmatprep.subr.mxu0 0.0
    %1571 = vmatpush1.xpose.msra.mxu0 0.0
    %1572 = vmatprep.subr.mxu0 0.0
    %1573 = vmatpush1.xpose.msra.mxu0 0.0
    %1574 = vmatprep.mubr.f32.mxu0 0.0
    %1575 = vmatmul.mubr.f32.gmra.mrb[0].mxu0 %v1504
    %v1576 = vpop.f32.mrb[0].mxu0
    %v1577 = vadd.f32 %v415, %v1576
    %v1578 = vpop.f32.mrb[0].mxu0
    %1579 = vdwg.mxu0
    %v1580 = vsel %vm575, %v1495, -inf
    %1581 = vmax.xlane.f32.xlu0 %v1580
    %v1582 = vpop.xlane.xlu0 %1581
    %v1583 = vsel %vm575, %v1577, -inf
    %1584 = vmax.xlane.f32.xlu0 %v1583
    %v1585 = vpop.xlane.xlu0 %1584
    %v1586 = vsub.f32 %v1495, %v1582
    %v1587 = vsub.f32 %v1577, %v1585
    %v1588 = vmul.f32 %v1586, 1.442695
    %v1589 = vpow.pop %v1588
    %v1590 = vmul.f32 %v1587, 1.442695
    %v1591 = vpow.pop %v1590
    %v1592 = vsel %vm575, %v1589, 0.0
    %1593 = vadd.xlane.f32.xlu0 %v1592
    %v1594 = vpop.xlane.xlu0 %1593
    %v1595 = vsel %vm575, %v1591, 0.0
    %1596 = vadd.xlane.f32.xlu0 %v1595
    %v1597 = vpop.xlane.xlu0 %1596
    %v1598 = vrcp.pop %v1594
    %v1599 = vmul.f32 %v1589, %v1598
    %v1600 = vrcp.pop %v1597
    %v1601 = vmul.f32 %v1591, %v1600
    %v1604 = vrot.slane %v1601, 7
    %v1605 = vsel %vm601, %v1604, %v1599
    %v1607 = vrot.slane %v1599, 1
    %v1608 = vsel %vm601, %v1601, %v1607
    %1609 = vrot.lane.b32.xlu0 %v1608, 16
    %v1610 = vpop.permute.xlu0 %1609
    %v1612 = vrot.slane %v1599, 2
    %v1613 = vrot.slane %v1601, 1
    %v1614 = vsel %vm601, %v1613, %v1612
    %1615 = vrot.lane.b32.xlu0 %v1614, 32
    %v1616 = vpop.permute.xlu0 %1615
    %v1618 = vrot.slane %v1599, 3
    %v1619 = vrot.slane %v1601, 2
    %v1620 = vsel %vm601, %v1619, %v1618
    %1621 = vrot.lane.b32.xlu0 %v1620, 48
    %v1622 = vpop.permute.xlu0 %1621
    %v1624 = vrot.slane %v1599, 4
    %v1625 = vrot.slane %v1601, 3
    %v1626 = vsel %vm601, %v1625, %v1624
    %1627 = vrot.lane.b32.xlu0 %v1626, 64
    %v1628 = vpop.permute.xlu0 %1627
    %v1630 = vrot.slane %v1599, 5
    %v1631 = vrot.slane %v1601, 4
    %v1632 = vsel %vm601, %v1631, %v1630
    %1633 = vrot.lane.b32.xlu0 %v1632, 80
    %v1634 = vpop.permute.xlu0 %1633
    %v1636 = vrot.slane %v1599, 6
    %v1637 = vrot.slane %v1601, 5
    %v1638 = vsel %vm601, %v1637, %v1636
    %1639 = vrot.lane.b32.xlu0 %v1638, 96
    %v1640 = vpop.permute.xlu0 %1639
    %v1642 = vrot.slane %v1599, 7
    %v1643 = vrot.slane %v1601, 6
    %v1644 = vsel %vm601, %v1643, %v1642
    %1645 = vrot.lane.b32.xlu0 %v1644, 112
    %v1646 = vpop.permute.xlu0 %1645
    %v1648 = vsel %vm575, %v1605, %v1610
    %v1649 = vsel %vm137, %v1648, %v1616
    %v1650 = vsel %vm647, %v1649, %v1622
    %v1651 = vsel %vm649, %v1650, %v1628
    %v1652 = vsel %vm651, %v1651, %v1634
    %v1653 = vsel %vm653, %v1652, %v1640
    %v1654 = vsel %vm655, %v1653, %v1646
    %v1657 = vunpack.c.l.s4 1966171168
    %v1658 = vunpack.c.0.s8 %v1657
    %v1659 = vlaneseq
    %v1660 = vshrl.u32 %v1659, 7
    %v1661 = vsub.s32 %v1658, %v1660
    %v1662 = vrot.slane %v1654, %v1661
    %v1663 = vcombine.high %v1662, %v1662
    %v1665 = vunpack.c.l.s4 1966171168
    %v1666 = vunpack.c.0.s8 %v1665
    %v1667 = vlaneseq
    %v1668 = vshrl.u32 %v1667, 7
    %v1669 = vsub.s32 %v1666, %v1668
    %v1670 = vrot.slane %v1662, %v1669
    %v1672 = vunpack.c.l.s4 1966171168
    %v1673 = vunpack.c.0.s8 %v1672
    %v1674 = vlaneseq
    %v1675 = vshrl.u32 %v1674, 7
    %v1676 = vsub.s32 %v1673, %v1675
    %v1677 = vrot.slane %v1663, %v1676
    %1680 = vst [vmem:[#allocation14 + $0x2] sm:$0x1] %v1670
    %1681 = vst [vmem:[#allocation14 + $0x6] sm:$0x1] %v1677
    %1682 = vrot.lane.b32.xlu0 %v397, 112
    %v1683 = vpop.permute.xlu0 %1682
    %1684 = vrot.lane.b32.xlu0 %v402, 112
    %v1685 = vpop.permute.xlu0 %1684
    %v1688 = vsel %vm575, %v1599, 0
    %1690 = vmatprep.subr.mxu0 0.0
    %1691 = vmatpush1.msra.mxu0 %v1683
    %1692 = vmatprep.subr.mxu0 0.0
    %1693 = vmatpush1.msra.mxu0 %v1685
    %1694 = vmatprep.subr.mxu0 0.0
    %1695 = vmatpush1.msra.mxu0 0.0
    %1696 = vmatprep.subr.mxu0 0.0
    %1697 = vmatpush1.msra.mxu0 0.0
    %1698 = vmatprep.subr.mxu0 0.0
    %1699 = vmatpush1.msra.mxu0 0.0
    %1700 = vmatprep.subr.mxu0 0.0
    %1701 = vmatpush1.msra.mxu0 0.0
    %1702 = vmatprep.subr.mxu0 0.0
    %1703 = vmatpush1.msra.mxu0 0.0
    %1704 = vmatprep.subr.mxu0 0.0
    %1705 = vmatpush1.msra.mxu0 0.0
    %1706 = vmatprep.subr.mxu0 0.0
    %1707 = vmatpush1.msra.mxu0 0.0
    %1708 = vmatprep.subr.mxu0 0.0
    %1709 = vmatpush1.msra.mxu0 0.0
    %1710 = vmatprep.subr.mxu0 0.0
    %1711 = vmatpush1.msra.mxu0 0.0
    %1712 = vmatprep.subr.mxu0 0.0
    %1713 = vmatpush1.msra.mxu0 0.0
    %1714 = vmatprep.subr.mxu0 0.0
    %1715 = vmatpush1.msra.mxu0 0.0
    %1716 = vmatprep.subr.mxu0 0.0
    %1717 = vmatpush1.msra.mxu0 0.0
    %1718 = vmatprep.subr.mxu0 0.0
    %1719 = vmatpush1.msra.mxu0 0.0
    %1720 = vmatprep.subr.mxu0 0.0
    %1721 = vmatpush1.msra.mxu0 0.0
    %1722 = vmatprep.subr.mxu0 0.0
    %1723 = vmatpush1.msra.mxu0 0.0
    %1724 = vmatprep.subr.mxu0 0.0
    %1725 = vmatpush1.msra.mxu0 0.0
    %1726 = vmatprep.subr.mxu0 0.0
    %1727 = vmatpush1.msra.mxu0 0.0
    %1728 = vmatprep.subr.mxu0 0.0
    %1729 = vmatpush1.msra.mxu0 0.0
    %1730 = vmatprep.subr.mxu0 0.0
    %1731 = vmatpush1.msra.mxu0 0.0
    %1732 = vmatprep.subr.mxu0 0.0
    %1733 = vmatpush1.msra.mxu0 0.0
    %1734 = vmatprep.subr.mxu0 0.0
    %1735 = vmatpush1.msra.mxu0 0.0
    %1736 = vmatprep.subr.mxu0 0.0
    %1737 = vmatpush1.msra.mxu0 0.0
    %1738 = vmatprep.subr.mxu0 0.0
    %1739 = vmatpush1.msra.mxu0 0.0
    %1740 = vmatprep.subr.mxu0 0.0
    %1741 = vmatpush1.msra.mxu0 0.0
    %1742 = vmatprep.subr.mxu0 0.0
    %1743 = vmatpush1.msra.mxu0 0.0
    %1744 = vmatprep.subr.mxu0 0.0
    %1745 = vmatpush1.msra.mxu0 0.0
    %1746 = vmatprep.subr.mxu0 0.0
    %1747 = vmatpush1.msra.mxu0 0.0
    %1748 = vmatprep.subr.mxu0 0.0
    %1749 = vmatpush1.msra.mxu0 0.0
    %1750 = vmatprep.subr.mxu0 0.0
    %1751 = vmatpush1.msra.mxu0 0.0
    %1752 = vmatprep.subr.mxu0 0.0
    %1753 = vmatpush1.msra.mxu0 0.0
    %1754 = vmatprep.mubr.f32.mxu0 0.0
    %1755 = vmatmul.mubr.f32.gmra.mrb[0].mxu0 %v1688
    %v1756 = vpop.f32.mrb[0].mxu0
    %v1757 = vadd.f32 0.0, %v1756
    %v1758 = vpop.f32.mrb[0].mxu0
    %1759 = vdwg.mxu0
    %1760 = vrot.lane.b32.xlu0 %v407, 112
    %v1761 = vpop.permute.xlu0 %1760
    %1762 = vrot.lane.b32.xlu0 %v412, 112
    %v1763 = vpop.permute.xlu0 %1762
    %v1766 = vsel %vm575, %v1601, 0
    %1768 = vmatprep.subr.mxu0 0.0
    %1769 = vmatpush1.msra.mxu0 %v1761
    %1770 = vmatprep.subr.mxu0 0.0
    %1771 = vmatpush1.msra.mxu0 %v1763
    %1772 = vmatprep.subr.mxu0 0.0
    %1773 = vmatpush1.msra.mxu0 0.0
    %1774 = vmatprep.subr.mxu0 0.0
    %1775 = vmatpush1.msra.mxu0 0.0
    %1776 = vmatprep.subr.mxu0 0.0
    %1777 = vmatpush1.msra.mxu0 0.0
    %1778 = vmatprep.subr.mxu0 0.0
    %1779 = vmatpush1.msra.mxu0 0.0
    %1780 = vmatprep.subr.mxu0 0.0
    %1781 = vmatpush1.msra.mxu0 0.0
    %1782 = vmatprep.subr.mxu0 0.0
    %1783 = vmatpush1.msra.mxu0 0.0
    %1784 = vmatprep.subr.mxu0 0.0
    %1785 = vmatpush1.msra.mxu0 0.0
    %1786 = vmatprep.subr.mxu0 0.0
    %1787 = vmatpush1.msra.mxu0 0.0
    %1788 = vmatprep.subr.mxu0 0.0
    %1789 = vmatpush1.msra.mxu0 0.0
    %1790 = vmatprep.subr.mxu0 0.0
    %1791 = vmatpush1.msra.mxu0 0.0
    %1792 = vmatprep.subr.mxu0 0.0
    %1793 = vmatpush1.msra.mxu0 0.0
    %1794 = vmatprep.subr.mxu0 0.0
    %1795 = vmatpush1.msra.mxu0 0.0
    %1796 = vmatprep.subr.mxu0 0.0
    %1797 = vmatpush1.msra.mxu0 0.0
    %1798 = vmatprep.subr.mxu0 0.0
    %1799 = vmatpush1.msra.mxu0 0.0
    %1800 = vmatprep.subr.mxu0 0.0
    %1801 = vmatpush1.msra.mxu0 0.0
    %1802 = vmatprep.subr.mxu0 0.0
    %1803 = vmatpush1.msra.mxu0 0.0
    %1804 = vmatprep.subr.mxu0 0.0
    %1805 = vmatpush1.msra.mxu0 0.0
    %1806 = vmatprep.subr.mxu0 0.0
    %1807 = vmatpush1.msra.mxu0 0.0
    %1808 = vmatprep.subr.mxu0 0.0
    %1809 = vmatpush1.msra.mxu0 0.0
    %1810 = vmatprep.subr.mxu0 0.0
    %1811 = vmatpush1.msra.mxu0 0.0
    %1812 = vmatprep.subr.mxu0 0.0
    %1813 = vmatpush1.msra.mxu0 0.0
    %1814 = vmatprep.subr.mxu0 0.0
    %1815 = vmatpush1.msra.mxu0 0.0
    %1816 = vmatprep.subr.mxu0 0.0
    %1817 = vmatpush1.msra.mxu0 0.0
    %1818 = vmatprep.subr.mxu0 0.0
    %1819 = vmatpush1.msra.mxu0 0.0
    %1820 = vmatprep.subr.mxu0 0.0
    %1821 = vmatpush1.msra.mxu0 0.0
    %1822 = vmatprep.subr.mxu0 0.0
    %1823 = vmatpush1.msra.mxu0 0.0
    %1824 = vmatprep.subr.mxu0 0.0
    %1825 = vmatpush1.msra.mxu0 0.0
    %1826 = vmatprep.subr.mxu0 0.0
    %1827 = vmatpush1.msra.mxu0 0.0
    %1828 = vmatprep.subr.mxu0 0.0
    %1829 = vmatpush1.msra.mxu0 0.0
    %1830 = vmatprep.subr.mxu0 0.0
    %1831 = vmatpush1.msra.mxu0 0.0
    %1832 = vmatprep.mubr.f32.mxu0 0.0
    %1833 = vmatmul.mubr.f32.gmra.mrb[0].mxu0 %v1766
    %v1834 = vpop.f32.mrb[0].mxu0
    %v1835 = vadd.f32 0.0, %v1834
    %v1836 = vpop.f32.mrb[0].mxu0
    %1837 = vdwg.mxu0
    %v1839 = vsel %vm416, %v1757, 0
    %v1842 = vsel %vm416, %v1835, 0
    %1844 = vmatprep.subr.mxu0 0.0
    %1845 = vmatpush1.msra.mxu0 %v135
    %1846 = vmatprep.subr.mxu0 0.0
    %1847 = vmatpush1.msra.mxu0 0.0
    %1848 = vmatprep.subr.mxu0 0.0
    %1849 = vmatpush1.msra.mxu0 0.0
    %1850 = vmatprep.subr.mxu0 0.0
    %1851 = vmatpush1.msra.mxu0 0.0
    %1852 = vmatprep.subr.mxu0 0.0
    %1853 = vmatpush1.msra.mxu0 0.0
    %1854 = vmatprep.subr.mxu0 0.0
    %1855 = vmatpush1.msra.mxu0 0.0
    %1856 = vmatprep.subr.mxu0 0.0
    %1857 = vmatpush1.msra.mxu0 0.0
    %1858 = vmatprep.subr.mxu0 0.0
    %1859 = vmatpush1.msra.mxu0 0.0
    %1860 = vmatprep.subr.mxu0 0.0
    %1861 = vmatpush1.msra.mxu0 0.0
    %1862 = vmatprep.subr.mxu0 0.0
    %1863 = vmatpush1.msra.mxu0 0.0
    %1864 = vmatprep.subr.mxu0 0.0
    %1865 = vmatpush1.msra.mxu0 0.0
    %1866 = vmatprep.subr.mxu0 0.0
    %1867 = vmatpush1.msra.mxu0 0.0
    %1868 = vmatprep.subr.mxu0 0.0
    %1869 = vmatpush1.msra.mxu0 0.0
    %1870 = vmatprep.subr.mxu0 0.0
    %1871 = vmatpush1.msra.mxu0 0.0
    %1872 = vmatprep.subr.mxu0 0.0
    %1873 = vmatpush1.msra.mxu0 0.0
    %1874 = vmatprep.subr.mxu0 0.0
    %1875 = vmatpush1.msra.mxu0 0.0
    %1876 = vmatprep.subr.mxu0 0.0
    %1877 = vmatpush1.msra.mxu0 0.0
    %1878 = vmatprep.subr.mxu0 0.0
    %1879 = vmatpush1.msra.mxu0 0.0
    %1880 = vmatprep.subr.mxu0 0.0
    %1881 = vmatpush1.msra.mxu0 0.0
    %1882 = vmatprep.subr.mxu0 0.0
    %1883 = vmatpush1.msra.mxu0 0.0
    %1884 = vmatprep.subr.mxu0 0.0
    %1885 = vmatpush1.msra.mxu0 0.0
    %1886 = vmatprep.subr.mxu0 0.0
    %1887 = vmatpush1.msra.mxu0 0.0
    %1888 = vmatprep.subr.mxu0 0.0
    %1889 = vmatpush1.msra.mxu0 0.0
    %1890 = vmatprep.subr.mxu0 0.0
    %1891 = vmatpush1.msra.mxu0 0.0
    %1892 = vmatprep.subr.mxu0 0.0
    %1893 = vmatpush1.msra.mxu0 0.0
    %1894 = vmatprep.subr.mxu0 0.0
    %1895 = vmatpush1.msra.mxu0 0.0
    %1896 = vmatprep.subr.mxu0 0.0
    %1897 = vmatpush1.msra.mxu0 0.0
    %1898 = vmatprep.subr.mxu0 0.0
    %1899 = vmatpush1.msra.mxu0 0.0
    %1900 = vmatprep.subr.mxu0 0.0
    %1901 = vmatpush1.msra.mxu0 0.0
    %1902 = vmatprep.subr.mxu0 0.0
    %1903 = vmatpush1.msra.mxu0 0.0
    %1904 = vmatprep.subr.mxu0 0.0
    %1905 = vmatpush1.msra.mxu0 0.0
    %1906 = vmatprep.subr.mxu0 0.0
    %1907 = vmatpush1.msra.mxu0 0.0
    %1908 = vmatprep.mubr.f32.mxu0 0.0
    %1909 = vmatmul.mubr.f32.gmra.mrb[0].mxu0 %v1839
    %v1910 = vpop.f32.mrb[0].mxu0
    %v1911 = vadd.f32 0.0, %v1910
    %v1912 = vpop.f32.mrb[0].mxu0
    %1913 = vmatprep.mubr.f32.mxu0 0.0
    %1914 = vmatmul.mubr.f32.gmra.mrb[0].mxu0 %v1842
    %v1915 = vpop.f32.mrb[0].mxu0
    %v1916 = vadd.f32 0.0, %v1915
    %v1917 = vpop.f32.mrb[0].mxu0
    %1918 = vdwg.mxu0
    %v1919 = vadd.f32 %v1408, %v1911
    %v1920 = vadd.f32 %v1413, %v1916
    %1921 = vrot.lane.b32.xlu0 %v219, 104
    %v1922 = vpop.permute.xlu0 %1921
    %1923 = vrot.lane.b32.xlu0 %v300, 104
    %v1924 = vpop.permute.xlu0 %1923
    %1925 = vrot.lane.b32.xlu0 %v305, 104
    %v1926 = vpop.permute.xlu0 %1925
    %v1927 = vsel %vm416, %v1922, 0
    %v1929 = vsel %vm416, %v1924, 0
    %v1931 = vsel %vm416, %v1926, 0
    %1933 = vmatprep.subr.mxu0 0.0
    %1934 = vmatpush1.xpose.msra.mxu0 %v1929
    %1935 = vmatprep.subr.mxu0 0.0
    %1936 = vmatpush1.xpose.msra.mxu0 %v1931
    %1937 = vmatprep.subr.mxu0 0.0
    %1938 = vmatpush1.xpose.msra.mxu0 0.0
    %1939 = vmatprep.subr.mxu0 0.0
    %1940 = vmatpush1.xpose.msra.mxu0 0.0
    %1941 = vmatprep.subr.mxu0 0.0
    %1942 = vmatpush1.xpose.msra.mxu0 0.0
    %1943 = vmatprep.subr.mxu0 0.0
    %1944 = vmatpush1.xpose.msra.mxu0 0.0
    %1945 = vmatprep.subr.mxu0 0.0
    %1946 = vmatpush1.xpose.msra.mxu0 0.0
    %1947 = vmatprep.subr.mxu0 0.0
    %1948 = vmatpush1.xpose.msra.mxu0 0.0
    %1949 = vmatprep.subr.mxu0 0.0
    %1950 = vmatpush1.xpose.msra.mxu0 0.0
    %1951 = vmatprep.subr.mxu0 0.0
    %1952 = vmatpush1.xpose.msra.mxu0 0.0
    %1953 = vmatprep.subr.mxu0 0.0
    %1954 = vmatpush1.xpose.msra.mxu0 0.0
    %1955 = vmatprep.subr.mxu0 0.0
    %1956 = vmatpush1.xpose.msra.mxu0 0.0
    %1957 = vmatprep.subr.mxu0 0.0
    %1958 = vmatpush1.xpose.msra.mxu0 0.0
    %1959 = vmatprep.subr.mxu0 0.0
    %1960 = vmatpush1.xpose.msra.mxu0 0.0
    %1961 = vmatprep.subr.mxu0 0.0
    %1962 = vmatpush1.xpose.msra.mxu0 0.0
    %1963 = vmatprep.subr.mxu0 0.0
    %1964 = vmatpush1.xpose.msra.mxu0 0.0
    %1965 = vmatprep.subr.mxu0 0.0
    %1966 = vmatpush1.xpose.msra.mxu0 0.0
    %1967 = vmatprep.subr.mxu0 0.0
    %1968 = vmatpush1.xpose.msra.mxu0 0.0
    %1969 = vmatprep.subr.mxu0 0.0
    %1970 = vmatpush1.xpose.msra.mxu0 0.0
    %1971 = vmatprep.subr.mxu0 0.0
    %1972 = vmatpush1.xpose.msra.mxu0 0.0
    %1973 = vmatprep.subr.mxu0 0.0
    %1974 = vmatpush1.xpose.msra.mxu0 0.0
    %1975 = vmatprep.subr.mxu0 0.0
    %1976 = vmatpush1.xpose.msra.mxu0 0.0
    %1977 = vmatprep.subr.mxu0 0.0
    %1978 = vmatpush1.xpose.msra.mxu0 0.0
    %1979 = vmatprep.subr.mxu0 0.0
    %1980 = vmatpush1.xpose.msra.mxu0 0.0
    %1981 = vmatprep.subr.mxu0 0.0
    %1982 = vmatpush1.xpose.msra.mxu0 0.0
    %1983 = vmatprep.subr.mxu0 0.0
    %1984 = vmatpush1.xpose.msra.mxu0 0.0
    %1985 = vmatprep.subr.mxu0 0.0
    %1986 = vmatpush1.xpose.msra.mxu0 0.0
    %1987 = vmatprep.subr.mxu0 0.0
    %1988 = vmatpush1.xpose.msra.mxu0 0.0
    %1989 = vmatprep.subr.mxu0 0.0
    %1990 = vmatpush1.xpose.msra.mxu0 0.0
    %1991 = vmatprep.subr.mxu0 0.0
    %1992 = vmatpush1.xpose.msra.mxu0 0.0
    %1993 = vmatprep.subr.mxu0 0.0
    %1994 = vmatpush1.xpose.msra.mxu0 0.0
    %1995 = vmatprep.subr.mxu0 0.0
    %1996 = vmatpush1.xpose.msra.mxu0 0.0
    %1997 = vmatprep.mubr.f32.mxu0 0.0
    %1998 = vmatmul.mubr.f32.gmra.mrb[0].mxu0 %v1927
    %v1999 = vpop.f32.mrb[0].mxu0
    %v2000 = vadd.f32 %v415, %v1999
    %v2001 = vpop.f32.mrb[0].mxu0
    %2002 = vdwg.mxu0
    %2003 = vrot.lane.b32.xlu0 %v220, 104
    %v2004 = vpop.permute.xlu0 %2003
    %2005 = vrot.lane.b32.xlu0 %v310, 104
    %v2006 = vpop.permute.xlu0 %2005
    %2007 = vrot.lane.b32.xlu0 %v315, 104
    %v2008 = vpop.permute.xlu0 %2007
    %v2009 = vsel %vm416, %v2004, 0
    %v2011 = vsel %vm416, %v2006, 0
    %v2013 = vsel %vm416, %v2008, 0
    %2015 = vmatprep.subr.mxu0 0.0
    %2016 = vmatpush1.xpose.msra.mxu0 %v2011
    %2017 = vmatprep.subr.mxu0 0.0
    %2018 = vmatpush1.xpose.msra.mxu0 %v2013
    %2019 = vmatprep.subr.mxu0 0.0
    %2020 = vmatpush1.xpose.msra.mxu0 0.0
    %2021 = vmatprep.subr.mxu0 0.0
    %2022 = vmatpush1.xpose.msra.mxu0 0.0
    %2023 = vmatprep.subr.mxu0 0.0
    %2024 = vmatpush1.xpose.msra.mxu0 0.0
    %2025 = vmatprep.subr.mxu0 0.0
    %2026 = vmatpush1.xpose.msra.mxu0 0.0
    %2027 = vmatprep.subr.mxu0 0.0
    %2028 = vmatpush1.xpose.msra.mxu0 0.0
    %2029 = vmatprep.subr.mxu0 0.0
    %2030 = vmatpush1.xpose.msra.mxu0 0.0
    %2031 = vmatprep.subr.mxu0 0.0
    %2032 = vmatpush1.xpose.msra.mxu0 0.0
    %2033 = vmatprep.subr.mxu0 0.0
    %2034 = vmatpush1.xpose.msra.mxu0 0.0
    %2035 = vmatprep.subr.mxu0 0.0
    %2036 = vmatpush1.xpose.msra.mxu0 0.0
    %2037 = vmatprep.subr.mxu0 0.0
    %2038 = vmatpush1.xpose.msra.mxu0 0.0
    %2039 = vmatprep.subr.mxu0 0.0
    %2040 = vmatpush1.xpose.msra.mxu0 0.0
    %2041 = vmatprep.subr.mxu0 0.0
    %2042 = vmatpush1.xpose.msra.mxu0 0.0
    %2043 = vmatprep.subr.mxu0 0.0
    %2044 = vmatpush1.xpose.msra.mxu0 0.0
    %2045 = vmatprep.subr.mxu0 0.0
    %2046 = vmatpush1.xpose.msra.mxu0 0.0
    %2047 = vmatprep.subr.mxu0 0.0
    %2048 = vmatpush1.xpose.msra.mxu0 0.0
    %2049 = vmatprep.subr.mxu0 0.0
    %2050 = vmatpush1.xpose.msra.mxu0 0.0
    %2051 = vmatprep.subr.mxu0 0.0
    %2052 = vmatpush1.xpose.msra.mxu0 0.0
    %2053 = vmatprep.subr.mxu0 0.0
    %2054 = vmatpush1.xpose.msra.mxu0 0.0
    %2055 = vmatprep.subr.mxu0 0.0
    %2056 = vmatpush1.xpose.msra.mxu0 0.0
    %2057 = vmatprep.subr.mxu0 0.0
    %2058 = vmatpush1.xpose.msra.mxu0 0.0
    %2059 = vmatprep.subr.mxu0 0.0
    %2060 = vmatpush1.xpose.msra.mxu0 0.0
    %2061 = vmatprep.subr.mxu0 0.0
    %2062 = vmatpush1.xpose.msra.mxu0 0.0
    %2063 = vmatprep.subr.mxu0 0.0
    %2064 = vmatpush1.xpose.msra.mxu0 0.0
    %2065 = vmatprep.subr.mxu0 0.0
    %2066 = vmatpush1.xpose.msra.mxu0 0.0
    %2067 = vmatprep.subr.mxu0 0.0
    %2068 = vmatpush1.xpose.msra.mxu0 0.0
    %2069 = vmatprep.subr.mxu0 0.0
    %2070 = vmatpush1.xpose.msra.mxu0 0.0
    %2071 = vmatprep.subr.mxu0 0.0
    %2072 = vmatpush1.xpose.msra.mxu0 0.0
    %2073 = vmatprep.subr.mxu0 0.0
    %2074 = vmatpush1.xpose.msra.mxu0 0.0
    %2075 = vmatprep.subr.mxu0 0.0
    %2076 = vmatpush1.xpose.msra.mxu0 0.0
    %2077 = vmatprep.subr.mxu0 0.0
    %2078 = vmatpush1.xpose.msra.mxu0 0.0
    %2079 = vmatprep.mubr.f32.mxu0 0.0
    %2080 = vmatmul.mubr.f32.gmra.mrb[0].mxu0 %v2009
    %v2081 = vpop.f32.mrb[0].mxu0
    %v2082 = vadd.f32 %v415, %v2081
    %v2083 = vpop.f32.mrb[0].mxu0
    %2084 = vdwg.mxu0
    %v2085 = vsel %vm575, %v2000, -inf
    %2086 = vmax.xlane.f32.xlu0 %v2085
    %v2087 = vpop.xlane.xlu0 %2086
    %v2088 = vsel %vm575, %v2082, -inf
    %2089 = vmax.xlane.f32.xlu0 %v2088
    %v2090 = vpop.xlane.xlu0 %2089
    %v2091 = vsub.f32 %v2000, %v2087
    %v2092 = vsub.f32 %v2082, %v2090
    %v2093 = vmul.f32 %v2091, 1.442695
    %v2094 = vpow.pop %v2093
    %v2095 = vmul.f32 %v2092, 1.442695
    %v2096 = vpow.pop %v2095
    %v2097 = vsel %vm575, %v2094, 0.0
    %2098 = vadd.xlane.f32.xlu0 %v2097
    %v2099 = vpop.xlane.xlu0 %2098
    %v2100 = vsel %vm575, %v2096, 0.0
    %2101 = vadd.xlane.f32.xlu0 %v2100
    %v2102 = vpop.xlane.xlu0 %2101
    %v2103 = vrcp.pop %v2099
    %v2104 = vmul.f32 %v2094, %v2103
    %v2105 = vrcp.pop %v2102
    %v2106 = vmul.f32 %v2096, %v2105
    %v2109 = vrot.slane %v2106, 7
    %v2110 = vsel %vm601, %v2109, %v2104
    %v2112 = vrot.slane %v2104, 1
    %v2113 = vsel %vm601, %v2106, %v2112
    %2114 = vrot.lane.b32.xlu0 %v2113, 16
    %v2115 = vpop.permute.xlu0 %2114
    %v2117 = vrot.slane %v2104, 2
    %v2118 = vrot.slane %v2106, 1
    %v2119 = vsel %vm601, %v2118, %v2117
    %2120 = vrot.lane.b32.xlu0 %v2119, 32
    %v2121 = vpop.permute.xlu0 %2120
    %v2123 = vrot.slane %v2104, 3
    %v2124 = vrot.slane %v2106, 2
    %v2125 = vsel %vm601, %v2124, %v2123
    %2126 = vrot.lane.b32.xlu0 %v2125, 48
    %v2127 = vpop.permute.xlu0 %2126
    %v2129 = vrot.slane %v2104, 4
    %v2130 = vrot.slane %v2106, 3
    %v2131 = vsel %vm601, %v2130, %v2129
    %2132 = vrot.lane.b32.xlu0 %v2131, 64
    %v2133 = vpop.permute.xlu0 %2132
    %v2135 = vrot.slane %v2104, 5
    %v2136 = vrot.slane %v2106, 4
    %v2137 = vsel %vm601, %v2136, %v2135
    %2138 = vrot.lane.b32.xlu0 %v2137, 80
    %v2139 = vpop.permute.xlu0 %2138
    %v2141 = vrot.slane %v2104, 6
    %v2142 = vrot.slane %v2106, 5
    %v2143 = vsel %vm601, %v2142, %v2141
    %2144 = vrot.lane.b32.xlu0 %v2143, 96
    %v2145 = vpop.permute.xlu0 %2144
    %v2147 = vrot.slane %v2104, 7
    %v2148 = vrot.slane %v2106, 6
    %v2149 = vsel %vm601, %v2148, %v2147
    %2150 = vrot.lane.b32.xlu0 %v2149, 112
    %v2151 = vpop.permute.xlu0 %2150
    %v2153 = vsel %vm575, %v2110, %v2115
    %v2154 = vsel %vm137, %v2153, %v2121
    %v2155 = vsel %vm647, %v2154, %v2127
    %v2156 = vsel %vm649, %v2155, %v2133
    %v2157 = vsel %vm651, %v2156, %v2139
    %v2158 = vsel %vm653, %v2157, %v2145
    %v2159 = vsel %vm655, %v2158, %v2151
    %v2162 = vunpack.c.l.s4 1966171168
    %v2163 = vunpack.c.0.s8 %v2162
    %v2164 = vlaneseq
    %v2165 = vshrl.u32 %v2164, 7
    %v2166 = vsub.s32 %v2163, %v2165
    %v2167 = vrot.slane %v2159, %v2166
    %v2168 = vcombine.high %v2167, %v2167
    %v2170 = vunpack.c.l.s4 1966171168
    %v2171 = vunpack.c.0.s8 %v2170
    %v2172 = vlaneseq
    %v2173 = vshrl.u32 %v2172, 7
    %v2174 = vsub.s32 %v2171, %v2173
    %v2175 = vrot.slane %v2167, %v2174
    %v2177 = vunpack.c.l.s4 1966171168
    %v2178 = vunpack.c.0.s8 %v2177
    %v2179 = vlaneseq
    %v2180 = vshrl.u32 %v2179, 7
    %v2181 = vsub.s32 %v2178, %v2180
    %v2182 = vrot.slane %v2168, %v2181
    %2185 = vst [vmem:[#allocation14 + $0x3] sm:$0x1] %v2175
    %2186 = vst [vmem:[#allocation14 + $0x7] sm:$0x1] %v2182
    %2187 = vrot.lane.b32.xlu0 %v397, 104
    %v2188 = vpop.permute.xlu0 %2187
    %2189 = vrot.lane.b32.xlu0 %v402, 104
    %v2190 = vpop.permute.xlu0 %2189
    %v2193 = vsel %vm575, %v2104, 0
    %2195 = vmatprep.subr.mxu0 0.0
    %2196 = vmatpush1.msra.mxu0 %v2188
    %2197 = vmatprep.subr.mxu0 0.0
    %2198 = vmatpush1.msra.mxu0 %v2190
    %2199 = vmatprep.subr.mxu0 0.0
    %2200 = vmatpush1.msra.mxu0 0.0
    %2201 = vmatprep.subr.mxu0 0.0
    %2202 = vmatpush1.msra.mxu0 0.0
    %2203 = vmatprep.subr.mxu0 0.0
    %2204 = vmatpush1.msra.mxu0 0.0
    %2205 = vmatprep.subr.mxu0 0.0
    %2206 = vmatpush1.msra.mxu0 0.0
    %2207 = vmatprep.subr.mxu0 0.0
    %2208 = vmatpush1.msra.mxu0 0.0
    %2209 = vmatprep.subr.mxu0 0.0
    %2210 = vmatpush1.msra.mxu0 0.0
    %2211 = vmatprep.subr.mxu0 0.0
    %2212 = vmatpush1.msra.mxu0 0.0
    %2213 = vmatprep.subr.mxu0 0.0
    %2214 = vmatpush1.msra.mxu0 0.0
    %2215 = vmatprep.subr.mxu0 0.0
    %2216 = vmatpush1.msra.mxu0 0.0
    %2217 = vmatprep.subr.mxu0 0.0
    %2218 = vmatpush1.msra.mxu0 0.0
    %2219 = vmatprep.subr.mxu0 0.0
    %2220 = vmatpush1.msra.mxu0 0.0
    %2221 = vmatprep.subr.mxu0 0.0
    %2222 = vmatpush1.msra.mxu0 0.0
    %2223 = vmatprep.subr.mxu0 0.0
    %2224 = vmatpush1.msra.mxu0 0.0
    %2225 = vmatprep.subr.mxu0 0.0
    %2226 = vmatpush1.msra.mxu0 0.0
    %2227 = vmatprep.subr.mxu0 0.0
    %2228 = vmatpush1.msra.mxu0 0.0
    %2229 = vmatprep.subr.mxu0 0.0
    %2230 = vmatpush1.msra.mxu0 0.0
    %2231 = vmatprep.subr.mxu0 0.0
    %2232 = vmatpush1.msra.mxu0 0.0
    %2233 = vmatprep.subr.mxu0 0.0
    %2234 = vmatpush1.msra.mxu0 0.0
    %2235 = vmatprep.subr.mxu0 0.0
    %2236 = vmatpush1.msra.mxu0 0.0
    %2237 = vmatprep.subr.mxu0 0.0
    %2238 = vmatpush1.msra.mxu0 0.0
    %2239 = vmatprep.subr.mxu0 0.0
    %2240 = vmatpush1.msra.mxu0 0.0
    %2241 = vmatprep.subr.mxu0 0.0
    %2242 = vmatpush1.msra.mxu0 0.0
    %2243 = vmatprep.subr.mxu0 0.0
    %2244 = vmatpush1.msra.mxu0 0.0
    %2245 = vmatprep.subr.mxu0 0.0
    %2246 = vmatpush1.msra.mxu0 0.0
    %2247 = vmatprep.subr.mxu0 0.0
    %2248 = vmatpush1.msra.mxu0 0.0
    %2249 = vmatprep.subr.mxu0 0.0
    %2250 = vmatpush1.msra.mxu0 0.0
    %2251 = vmatprep.subr.mxu0 0.0
    %2252 = vmatpush1.msra.mxu0 0.0
    %2253 = vmatprep.subr.mxu0 0.0
    %2254 = vmatpush1.msra.mxu0 0.0
    %2255 = vmatprep.subr.mxu0 0.0
    %2256 = vmatpush1.msra.mxu0 0.0
    %2257 = vmatprep.subr.mxu0 0.0
    %2258 = vmatpush1.msra.mxu0 0.0
    %2259 = vmatprep.mubr.f32.mxu0 0.0
    %2260 = vmatmul.mubr.f32.gmra.mrb[0].mxu0 %v2193
    %v2261 = vpop.f32.mrb[0].mxu0
    %v2262 = vadd.f32 0.0, %v2261
    %v2263 = vpop.f32.mrb[0].mxu0
    %2264 = vdwg.mxu0
    %2265 = vrot.lane.b32.xlu0 %v407, 104
    %v2266 = vpop.permute.xlu0 %2265
    %2267 = vrot.lane.b32.xlu0 %v412, 104
    %v2268 = vpop.permute.xlu0 %2267
    %v2271 = vsel %vm575, %v2106, 0
    %2273 = vmatprep.subr.mxu0 0.0
    %2274 = vmatpush1.msra.mxu0 %v2266
    %2275 = vmatprep.subr.mxu0 0.0
    %2276 = vmatpush1.msra.mxu0 %v2268
    %2277 = vmatprep.subr.mxu0 0.0
    %2278 = vmatpush1.msra.mxu0 0.0
    %2279 = vmatprep.subr.mxu0 0.0
    %2280 = vmatpush1.msra.mxu0 0.0
    %2281 = vmatprep.subr.mxu0 0.0
    %2282 = vmatpush1.msra.mxu0 0.0
    %2283 = vmatprep.subr.mxu0 0.0
    %2284 = vmatpush1.msra.mxu0 0.0
    %2285 = vmatprep.subr.mxu0 0.0
    %2286 = vmatpush1.msra.mxu0 0.0
    %2287 = vmatprep.subr.mxu0 0.0
    %2288 = vmatpush1.msra.mxu0 0.0
    %2289 = vmatprep.subr.mxu0 0.0
    %2290 = vmatpush1.msra.mxu0 0.0
    %2291 = vmatprep.subr.mxu0 0.0
    %2292 = vmatpush1.msra.mxu0 0.0
    %2293 = vmatprep.subr.mxu0 0.0
    %2294 = vmatpush1.msra.mxu0 0.0
    %2295 = vmatprep.subr.mxu0 0.0
    %2296 = vmatpush1.msra.mxu0 0.0
    %2297 = vmatprep.subr.mxu0 0.0
    %2298 = vmatpush1.msra.mxu0 0.0
    %2299 = vmatprep.subr.mxu0 0.0
    %2300 = vmatpush1.msra.mxu0 0.0
    %2301 = vmatprep.subr.mxu0 0.0
    %2302 = vmatpush1.msra.mxu0 0.0
    %2303 = vmatprep.subr.mxu0 0.0
    %2304 = vmatpush1.msra.mxu0 0.0
    %2305 = vmatprep.subr.mxu0 0.0
    %2306 = vmatpush1.msra.mxu0 0.0
    %2307 = vmatprep.subr.mxu0 0.0
    %2308 = vmatpush1.msra.mxu0 0.0
    %2309 = vmatprep.subr.mxu0 0.0
    %2310 = vmatpush1.msra.mxu0 0.0
    %2311 = vmatprep.subr.mxu0 0.0
    %2312 = vmatpush1.msra.mxu0 0.0
    %2313 = vmatprep.subr.mxu0 0.0
    %2314 = vmatpush1.msra.mxu0 0.0
    %2315 = vmatprep.subr.mxu0 0.0
    %2316 = vmatpush1.msra.mxu0 0.0
    %2317 = vmatprep.subr.mxu0 0.0
    %2318 = vmatpush1.msra.mxu0 0.0
    %2319 = vmatprep.subr.mxu0 0.0
    %2320 = vmatpush1.msra.mxu0 0.0
    %2321 = vmatprep.subr.mxu0 0.0
    %2322 = vmatpush1.msra.mxu0 0.0
    %2323 = vmatprep.subr.mxu0 0.0
    %2324 = vmatpush1.msra.mxu0 0.0
    %2325 = vmatprep.subr.mxu0 0.0
    %2326 = vmatpush1.msra.mxu0 0.0
    %2327 = vmatprep.subr.mxu0 0.0
    %2328 = vmatpush1.msra.mxu0 0.0
    %2329 = vmatprep.subr.mxu0 0.0
    %2330 = vmatpush1.msra.mxu0 0.0
    %2331 = vmatprep.subr.mxu0 0.0
    %2332 = vmatpush1.msra.mxu0 0.0
    %2333 = vmatprep.subr.mxu0 0.0
    %2334 = vmatpush1.msra.mxu0 0.0
    %2335 = vmatprep.subr.mxu0 0.0
    %2336 = vmatpush1.msra.mxu0 0.0
    %2337 = vmatprep.mubr.f32.mxu0 0.0
    %2338 = vmatmul.mubr.f32.gmra.mrb[0].mxu0 %v2271
    %v2339 = vpop.f32.mrb[0].mxu0
    %v2340 = vadd.f32 0.0, %v2339
    %v2341 = vpop.f32.mrb[0].mxu0
    %2342 = vdwg.mxu0
    %v2344 = vsel %vm416, %v2262, 0
    %v2347 = vsel %vm416, %v2340, 0
    %2349 = vmatprep.subr.mxu0 0.0
    %2350 = vmatpush1.msra.mxu0 %v136
    %2351 = vmatprep.subr.mxu0 0.0
    %2352 = vmatpush1.msra.mxu0 0.0
    %2353 = vmatprep.subr.mxu0 0.0
    %2354 = vmatpush1.msra.mxu0 0.0
    %2355 = vmatprep.subr.mxu0 0.0
    %2356 = vmatpush1.msra.mxu0 0.0
    %2357 = vmatprep.subr.mxu0 0.0
    %2358 = vmatpush1.msra.mxu0 0.0
    %2359 = vmatprep.subr.mxu0 0.0
    %2360 = vmatpush1.msra.mxu0 0.0
    %2361 = vmatprep.subr.mxu0 0.0
    %2362 = vmatpush1.msra.mxu0 0.0
    %2363 = vmatprep.subr.mxu0 0.0
    %2364 = vmatpush1.msra.mxu0 0.0
    %2365 = vmatprep.subr.mxu0 0.0
    %2366 = vmatpush1.msra.mxu0 0.0
    %2367 = vmatprep.subr.mxu0 0.0
    %2368 = vmatpush1.msra.mxu0 0.0
    %2369 = vmatprep.subr.mxu0 0.0
    %2370 = vmatpush1.msra.mxu0 0.0
    %2371 = vmatprep.subr.mxu0 0.0
    %2372 = vmatpush1.msra.mxu0 0.0
    %2373 = vmatprep.subr.mxu0 0.0
    %2374 = vmatpush1.msra.mxu0 0.0
    %2375 = vmatprep.subr.mxu0 0.0
    %2376 = vmatpush1.msra.mxu0 0.0
    %2377 = vmatprep.subr.mxu0 0.0
    %2378 = vmatpush1.msra.mxu0 0.0
    %2379 = vmatprep.subr.mxu0 0.0
    %2380 = vmatpush1.msra.mxu0 0.0
    %2381 = vmatprep.subr.mxu0 0.0
    %2382 = vmatpush1.msra.mxu0 0.0
    %2383 = vmatprep.subr.mxu0 0.0
    %2384 = vmatpush1.msra.mxu0 0.0
    %2385 = vmatprep.subr.mxu0 0.0
    %2386 = vmatpush1.msra.mxu0 0.0
    %2387 = vmatprep.subr.mxu0 0.0
    %2388 = vmatpush1.msra.mxu0 0.0
    %2389 = vmatprep.subr.mxu0 0.0
    %2390 = vmatpush1.msra.mxu0 0.0
    %2391 = vmatprep.subr.mxu0 0.0
    %2392 = vmatpush1.msra.mxu0 0.0
    %2393 = vmatprep.subr.mxu0 0.0
    %2394 = vmatpush1.msra.mxu0 0.0
    %2395 = vmatprep.subr.mxu0 0.0
    %2396 = vmatpush1.msra.mxu0 0.0
    %2397 = vmatprep.subr.mxu0 0.0
    %2398 = vmatpush1.msra.mxu0 0.0
    %2399 = vmatprep.subr.mxu0 0.0
    %2400 = vmatpush1.msra.mxu0 0.0
    %2401 = vmatprep.subr.mxu0 0.0
    %2402 = vmatpush1.msra.mxu0 0.0
    %2403 = vmatprep.subr.mxu0 0.0
    %2404 = vmatpush1.msra.mxu0 0.0
    %2405 = vmatprep.subr.mxu0 0.0
    %2406 = vmatpush1.msra.mxu0 0.0
    %2407 = vmatprep.subr.mxu0 0.0
    %2408 = vmatpush1.msra.mxu0 0.0
    %2409 = vmatprep.subr.mxu0 0.0
    %2410 = vmatpush1.msra.mxu0 0.0
    %2411 = vmatprep.subr.mxu0 0.0
    %2412 = vmatpush1.msra.mxu0 0.0
    %2413 = vmatprep.mubr.f32.mxu0 0.0
    %2414 = vmatmul.mubr.f32.gmra.mrb[0].mxu0 %v2344
    %v2415 = vpop.f32.mrb[0].mxu0
    %v2416 = vadd.f32 0.0, %v2415
    %v2417 = vpop.f32.mrb[0].mxu0
    %2418 = vmatprep.mubr.f32.mxu0 0.0
    %2419 = vmatmul.mubr.f32.gmra.mrb[0].mxu0 %v2347
    %v2420 = vpop.f32.mrb[0].mxu0
    %v2421 = vadd.f32 0.0, %v2420
    %v2422 = vpop.f32.mrb[0].mxu0
    %2423 = vdwg.mxu0
    %v2424 = vadd.f32 %v1919, %v2416
    %v2425 = vadd.f32 %v1920, %v2421
    %v2426 = vld [vmem:[%s6] sm:$0x1]
    %v2428 = vlaneseq
    %v2429 = vshrl.u32 %v2428, 7
    %v2430 = vsub.s32 0, %v2429
    %v2431 = vrot.slane %v2426, %v2430
    %v2433 = vadd.f32 %v2424, %v2431
    %v2434 = vadd.f32 %v2425, %v2431
    %v2437 = vrot.slane %v2434, 7
    %v2438 = vsel %vm601, %v2437, %v2433
    %v2440 = vrot.slane %v2433, 1
    %v2441 = vsel %vm601, %v2434, %v2440
    %2442 = vrot.lane.b32.xlu0 %v2441, 32
    %v2443 = vpop.permute.xlu0 %2442
    %v2445 = vrot.slane %v2433, 2
    %v2446 = vrot.slane %v2434, 1
    %v2447 = vsel %vm601, %v2446, %v2445
    %2448 = vrot.lane.b32.xlu0 %v2447, 64
    %v2449 = vpop.permute.xlu0 %2448
    %v2451 = vrot.slane %v2433, 3
    %v2452 = vrot.slane %v2434, 2
    %v2453 = vsel %vm601, %v2452, %v2451
    %2454 = vrot.lane.b32.xlu0 %v2453, 96
    %v2455 = vpop.permute.xlu0 %2454
    %v2457 = vrot.slane %v2433, 4
    %v2458 = vrot.slane %v2434, 3
    %v2459 = vsel %vm601, %v2458, %v2457
    %v2461 = vrot.slane %v2433, 5
    %v2462 = vrot.slane %v2434, 4
    %v2463 = vsel %vm601, %v2462, %v2461
    %2464 = vrot.lane.b32.xlu0 %v2463, 32
    %v2465 = vpop.permute.xlu0 %2464
    %v2467 = vrot.slane %v2433, 6
    %v2468 = vrot.slane %v2434, 5
    %v2469 = vsel %vm601, %v2468, %v2467
    %2470 = vrot.lane.b32.xlu0 %v2469, 64
    %v2471 = vpop.permute.xlu0 %2470
    %v2473 = vrot.slane %v2433, 7
    %v2474 = vrot.slane %v2434, 6
    %v2475 = vsel %vm601, %v2474, %v2473
    %2476 = vrot.lane.b32.xlu0 %v2475, 96
    %v2477 = vpop.permute.xlu0 %2476
    %v2479 = vsel %vm137, %v2438, %v2443
    %v2480 = vsel %vm649, %v2479, %v2449
    %v2481 = vsel %vm653, %v2480, %v2455
    %v2482 = vsel %vm137, %v2459, %v2465
    %v2483 = vsel %vm649, %v2482, %v2471
    %v2484 = vsel %vm653, %v2483, %v2477
    %v2487 = vcombine.low %v2481, %v2484
    %v2489 = vunpack.c.l.s4 1983009808
    %v2490 = vunpack.c.0.s8 %v2489
    %v2491 = vlaneseq
    %v2492 = vshrl.u32 %v2491, 7
    %v2493 = vsub.s32 %v2490, %v2492
    %v2494 = vrot.slane %v2487, %v2493
    %2496 = vst [vmem:[#allocation13] sm:$0xf] %v2494
    // Predicated region
    $region58: #{tpu_custom_call.1} parent=1 // pred_check
      _
    $region59: #{tpu_custom_call.1} parent=1 // pred_check_branch
      %2498 = sbr.rel (0) target = $region61
    $region60: #{tpu_custom_call.1} parent=1 // pred_region
      %s2500 = ssub.s32 64, 64
      %2501 = vsyncadd [#allocation4], %s2500
      %s2503 = sshll.u32 [#allocation13], 4
      %s2504 = int_to_ptr.vmem [resolvable:$true] %s2503
      %2506 = dma.vmem_to_hbm [thread:$0]  %s2504, 64, %s8, [#allocation4]
    $region61: #{tpu_custom_call.1} parent=1 // pred_fallthru
      _
    // Predicated region
    $region62: #{tpu_custom_call.1} parent=1 // pred_check
      _
    $region63: #{tpu_custom_call.1} parent=1 // pred_check_branch
      %2508 = sbr.rel (0) target = $region65
    $region64: #{tpu_custom_call.1} parent=1 // pred_region
      %s2510 = ssub.s32 128, 128
      %2511 = vsyncadd [#allocation15], %s2510
      %s2512 = sshll.u32 [#allocation14], 4
      %s2513 = int_to_ptr.vmem [resolvable:$true] %s2512
      %2518 = dma.vmem_to_hbm [thread:$0]  %s2513, 128, %s9, [#allocation15], 64, 64, 4
    $region65: #{tpu_custom_call.1} parent=1 // pred_fallthru
      _
    // Predicated region
    $region66: #{tpu_custom_call.1} parent=1 // pred_check
      _
    $region67: #{tpu_custom_call.1} parent=1 // pred_check_branch
      %2520 = sbr.rel (0) target = $region69
    $region68: #{tpu_custom_call.1} parent=1 // pred_region
      %2521 = dma.done [#allocation4], 64
    $region69: #{tpu_custom_call.1} parent=1 // pred_fallthru
      _
    // Predicated region
    $region70: #{tpu_custom_call.1} parent=1 // pred_check
      _
    $region71: #{tpu_custom_call.1} parent=1 // pred_check_branch
      %2523 = sbr.rel (0) target = $region73
    $region72: #{tpu_custom_call.1} parent=1 // pred_region
      %2524 = dma.done [#allocation15], 128
    $region73: #{tpu_custom_call.1} parent=1 // pred_fallthru
      _
    %2525 = vsyncpa [#allocation3], 1
    %2526 = vsyncpa [#allocation6], 1
    %2527 = vsyncpa [#allocation9], 1
    %2528 = vsyncpa [#allocation12], 1
    %2529 = vsyncpa [#allocation4], 1
    %2530 = vsyncpa [#allocation15], 1

</llo_original>
